<compile_context>
chip_gen: v7x
topology: tpu7x:2x2x1
jax: 0.10.0
libtpu: 0.0.40
codegen_flags: <defaults>
</compile_context>

<pallas_src>
import functools
import math

import jax
import jax.numpy as jnp
from jax.experimental import pallas as pl
from jax.experimental.pallas import tpu as pltpu

_LANE = 128


def _round_up(x, m):
    return ((x + m - 1) // m) * m


def _pad2d(x, rows, cols):
    return jnp.pad(x, ((0, rows - x.shape[0]), (0, cols - x.shape[1])))


def _sage_layer_kernel(a_ref, xs_ref, xd_ref, ws_ref, wn_ref, b_ref, o_ref,
                       acc_ref, self_ref, *, deg_col: int, out_ones_col,
                       apply_relu: bool):
    """One SAGEConv('mean') layer, tiled over (dst rows, src cols).

    a_ref   : (TM, TK)  bf16 adjacency tile, dst x src (streamed)
    xs_ref  : (TK, Fi)  bf16 src-node feature tile (aggregation RHS)
    xd_ref  : (TM, Fi)  bf16 dst-node feature tile (self projection; resident across k)
    ws_ref  : (Fi, Fo)  bf16 self weight      (VMEM resident)
    wn_ref  : (Fi, Fo)  bf16 neighbor weight  (VMEM resident)
    b_ref   : (1, Fo)   f32 bias              (VMEM resident)
    o_ref   : (TM, Fo)  output tile (bf16 for layer 1, f32 for layer 2)
    acc_ref : (TM, Fi)  f32 neighbor-sum accumulator (scratch); column `deg_col`
              accumulates the in-degree via the ones column of X.
    self_ref: (TM, Fo)  f32 hoisted self-projection + bias (scratch)
    """
    k = pl.program_id(1)

    @pl.when(k == 0)
    def _():
        acc_ref[...] = jnp.zeros_like(acc_ref)
        # Hoist X_dst @ W_self + bias out of the finalize step (inputs are resident
        # across k), balancing MXU work across the reduction axis.
        self_ref[...] = (
            jnp.dot(xd_ref[...], ws_ref[...], preferred_element_type=jnp.float32)
            + b_ref[...]
        )

    # Native bf16 x bf16 MXU path with f32 accumulation.  The ones column of xs makes
    # acc[:, deg_col] the exact in-degree (0/1 values are exact in bf16).
    acc_ref[...] += jnp.dot(a_ref[...], xs_ref[...],
                            preferred_element_type=jnp.float32)

    @pl.when(k == pl.num_programs(1) - 1)
    def _():
        acc = acc_ref[...]
        deg = acc[:, deg_col:deg_col + 1]                    # exact f32 degree
        dinv = jnp.where(deg > 0.0, 1.0 / jnp.maximum(deg, 1.0), 0.0)
        h_neigh = acc * dinv                                 # f32 elementwise (v5e-safe)
        out = self_ref[...] + jnp.dot(h_neigh.astype(jnp.bfloat16), wn_ref[...],
                                      preferred_element_type=jnp.float32)
        if apply_relu:
            out = jnp.maximum(out, 0.0)
        if out_ones_col is not None:
            # Carry a ones column so the next layer recovers its degree on the MXU too.
            col = jax.lax.broadcasted_iota(jnp.int32, out.shape, 1)
            out = jnp.where(col == out_ones_col, 1.0, out)
        o_ref[...] = out.astype(o_ref.dtype)


def sage_layer(a_bf16, x_bf16, w_self, w_neigh, bias, *, deg_col, out_ones_col,
               apply_relu, out_dtype, tm, tk):
    """a_bf16: (N, N) bf16 padded adjacency; x_bf16: (N, Fi) bf16 padded features."""
    n = a_bf16.shape[0]
    fi = x_bf16.shape[1]
    fo = w_self.shape[1]
    assert n % tm == 0 and n % tk == 0, (n, tm, tk)

    grid = (n // tm, n // tk)
    kernel = functools.partial(_sage_layer_kernel, deg_col=deg_col,
                               out_ones_col=out_ones_col, apply_relu=apply_relu)
    return pl.pallas_call(
        kernel,
        out_shape=jax.ShapeDtypeStruct((n, fo), out_dtype),
        grid_spec=pltpu.PrefetchScalarGridSpec(
            num_scalar_prefetch=0,
            grid=grid,
            in_specs=[
                pl.BlockSpec((tm, tk), lambda i, k: (i, k)),   # A tile (bf16, streamed)
                pl.BlockSpec((tk, fi), lambda i, k: (k, 0)),   # X src tile (bf16)
                pl.BlockSpec((tm, fi), lambda i, k: (i, 0)),   # X dst tile (bf16, resident over k)
                pl.BlockSpec((fi, fo), lambda i, k: (0, 0)),   # W_self  (bf16, resident)
                pl.BlockSpec((fi, fo), lambda i, k: (0, 0)),   # W_neigh (bf16, resident)
                pl.BlockSpec((1, fo), lambda i, k: (0, 0)),    # bias    (f32, resident)
            ],
            out_specs=pl.BlockSpec((tm, fo), lambda i, k: (i, 0)),
            scratch_shapes=[
                pltpu.VMEM((tm, fi), jnp.float32),   # neighbor-sum (+degree col) accumulator
                pltpu.VMEM((tm, fo), jnp.float32),   # hoisted self projection + bias
            ],
        ),
        compiler_params=pltpu.CompilerParams(
            dimension_semantics=("parallel", "arbitrary"),
        ),
    )(a_bf16, x_bf16, x_bf16, w_self, w_neigh, bias)


def sage_forward(a, x, params, *, tm=512, tk=2048):
    """2-layer SAGE: relu(conv1) -> conv2.  a: (N, N) dense dst x src adjacency."""
    n = a.shape[0]
    in_f = x.shape[1]
    h_f = params["w_self1"].shape[1]
    out_f = params["w_self2"].shape[1]

    # Clamp tiles to the graph size; defaults keep tk a multiple of tm so n_pad = max tile
    # (no lcm blow-up of the streamed A bytes).
    n128 = _round_up(n, _LANE)
    tm = min(tm, n128)
    tk = min(tk, n128)
    n_blk = math.lcm(tm, tk)
    n_pad = _round_up(n, n_blk)

    # Reserve one spare feature column per layer for the "ones" (degree) channel.
    fi_pad = _round_up(in_f + 1, _LANE)
    fh_pad = _round_up(h_f + 1, _LANE)
    fo_pad = _round_up(out_f, _LANE)

    # Adjacency padded directly in bf16 (values are exactly {0,1}) -> dominant HBM stream
    # is halved and no f32 N_pad^2 temp is ever materialized.
    a_p = jnp.pad(a.astype(jnp.bfloat16), ((0, n_pad - n), (0, n_pad - n)))

    # bf16 features with a ones column at index in_f (degree falls out of the MXU).
    x_p = jnp.concatenate(
        [x.astype(jnp.bfloat16),
         jnp.ones((n, 1), jnp.bfloat16),
         jnp.zeros((n, fi_pad - in_f - 1), jnp.bfloat16)], axis=1)
    x_p = jnp.pad(x_p, ((0, n_pad - n), (0, 0)))

    ws1 = _pad2d(params["w_self1"], fi_pad, fh_pad).astype(jnp.bfloat16)
    wn1 = _pad2d(params["w_neigh1"], fi_pad, fh_pad).astype(jnp.bfloat16)
    b1 = _pad2d(params["b1"], 1, fh_pad)                       # f32
    ws2 = _pad2d(params["w_self2"], fh_pad, fo_pad).astype(jnp.bfloat16)
    wn2 = _pad2d(params["w_neigh2"], fh_pad, fo_pad).astype(jnp.bfloat16)
    b2 = _pad2d(params["b2"], 1, fo_pad)                        # f32

    # Layer 1: bf16 output (halves inter-layer HBM traffic) + ones column at h_f.
    h = sage_layer(a_p, x_p, ws1, wn1, b1, deg_col=in_f, out_ones_col=h_f,
                   apply_relu=True, out_dtype=jnp.bfloat16, tm=tm, tk=tk)
    # Layer 2: final f32 output.
    out = sage_layer(a_p, h, ws2, wn2, b2, deg_col=h_f, out_ones_col=None,
                     apply_relu=False, out_dtype=jnp.float32, tm=tm, tk=tk)
    return out[:n, :out_f]


def init_params(key, in_feats, h_feats, out_feats):
    ks = jax.random.split(key, 4)
    s1 = 1.0 / jnp.sqrt(jnp.float32(in_feats))
    s2 = 1.0 / jnp.sqrt(jnp.float32(h_feats))
    return {
        "w_self1": jax.random.normal(ks[0], (in_feats, h_feats), jnp.float32) * s1,
        "w_neigh1": jax.random.normal(ks[1], (in_feats, h_feats), jnp.float32) * s1,
        "b1": jnp.zeros((1, h_feats), jnp.float32),
        "w_self2": jax.random.normal(ks[2], (h_feats, out_feats), jnp.float32) * s2,
        "w_neigh2": jax.random.normal(ks[3], (h_feats, out_feats), jnp.float32) * s2,
        "b2": jnp.zeros((1, out_feats), jnp.float32),
    }


def sage_reference(a, x, params):
    """Pure-JAX f32 reference with identical semantics (for a sanity check)."""
    deg = jnp.sum(a, axis=1, keepdims=True)
    dinv = jnp.where(deg > 0, 1.0 / jnp.maximum(deg, 1.0), 0.0)

    def layer(h, ws, wn, b, relu):
        hn = (a @ h) * dinv
        out = h @ ws + hn @ wn + b
        return jnp.maximum(out, 0.0) if relu else out

    h = layer(x, params["w_self1"], params["w_neigh1"], params["b1"], True)
    return layer(h, params["w_self2"], params["w_neigh2"], params["b2"], False)


if __name__ == "__main__":
    key = jax.random.PRNGKey(0)
    k_graph, k_feat, k_param = jax.random.split(key, 3)

    num_nodes = 300
    in_feats, h_feats, out_feats = 16, 32, 8

    # deterministic random directed graph (dense dst x src adjacency, no self-loops)
    adj = jax.random.bernoulli(k_graph, p=0.05, shape=(num_nodes, num_nodes))
    adj = adj & (~jnp.eye(num_nodes, dtype=bool))
    adj = adj.astype(jnp.float32)

    x = jax.random.normal(k_feat, (num_nodes, in_feats), jnp.float32)
    params = init_params(k_param, in_feats, h_feats, out_feats)

    # small tiles for the small demo graph (padded N = 384 -> grid (3, 3)) so the
    # k-accumulation / hoisted-self-projection path is actually exercised.
    out = jax.block_until_ready(sage_forward(adj, x, params, tm=128, tk=128))
    assert out.shape == (num_nodes, out_feats)
    assert bool(jnp.all(jnp.isfinite(out)))

    ref = jax.block_until_ready(sage_reference(adj, x, params))
    max_err = float(jnp.max(jnp.abs(out - ref)))
    # bf16 feature / weight streams (deliberate precision trade per perf review) ->
    # compare against the f32 reference with a bf16-appropriate tolerance.
    assert max_err < 1e-1, f"max abs err vs reference: {max_err}"

    print("KERNEL_OK")
</pallas_src>

<mosaic_0001>
module attributes {stable_mosaic.version = 11 : i64} {
  func.func @_sage_layer_kernel(%arg0: i32, %arg1: i32, %arg2: memref<128x128xbf16, #tpu.memory_space<vmem>>, %arg3: memref<128x128xbf16, #tpu.memory_space<vmem>>, %arg4: memref<128x128xbf16, #tpu.memory_space<vmem>>, %arg5: memref<128x128xbf16, #tpu.memory_space<vmem>>, %arg6: memref<128x128xbf16, #tpu.memory_space<vmem>>, %arg7: memref<1x128xf32, #tpu.memory_space<vmem>>, %arg8: memref<128x128xbf16, #tpu.memory_space<vmem>>, %arg9: memref<128x128xf32, #tpu.memory_space<vmem>>, %arg10: memref<128x128xf32, #tpu.memory_space<vmem>>) attributes {dimension_semantics = [#tpu.dimension_semantics<parallel>, #tpu.dimension_semantics<arbitrary>], iteration_bounds = array<i64: 3, 3>, scalar_prefetch = 0 : i64, scratch_operands = 2 : i64, tpu.core_type = #tpu.core_type<tc>, window_params = [{transform_indices = @transform_0, window_bounds = array<i64: 128, 128>}, {transform_indices = @transform_1, window_bounds = array<i64: 128, 128>}, {transform_indices = @transform_2, window_bounds = array<i64: 128, 128>}, {pipeline_mode = #tpu.pipeline_mode<synchronous>, transform_indices = @transform_3, window_bounds = array<i64: 128, 128>}, {pipeline_mode = #tpu.pipeline_mode<synchronous>, transform_indices = @transform_4, window_bounds = array<i64: 128, 128>}, {pipeline_mode = #tpu.pipeline_mode<synchronous>, transform_indices = @transform_5, window_bounds = array<i64: 1, 128>}, {transform_indices = @transform_6, window_bounds = array<i64: 128, 128>}]} {
    %c0_i32 = arith.constant 0 : i32
    %0 = arith.cmpi eq, %arg1, %c0_i32 : i32
    %1 = arith.extui %0 : i1 to i32
    %c0_i32_0 = arith.constant 0 : i32
    %2 = arith.cmpi ne, %1, %c0_i32_0 : i32
    scf.if %2 {
      %cst_9 = arith.constant 0.000000e+00 : f32
      %12 = vector.broadcast %cst_9 : f32 to vector<128x128xf32>
      %c0_10 = arith.constant 0 : index
      %c0_11 = arith.constant 0 : index
      %13 = vector.load %arg9[%c0_10, %c0_11] : memref<128x128xf32, #tpu.memory_space<vmem>>, vector<128x128xf32>
      tpu.vector_store %arg9[%c0_10, %c0_11], %12 {strides = array<i32>} : memref<128x128xf32, #tpu.memory_space<vmem>>, vector<128x128xf32>,
      %c0_12 = arith.constant 0 : index
      %c0_13 = arith.constant 0 : index
      %14 = vector.load %arg4[%c0_12, %c0_13] : memref<128x128xbf16, #tpu.memory_space<vmem>>, vector<128x128xbf16>
      %c0_14 = arith.constant 0 : index
      %c0_15 = arith.constant 0 : index
      %15 = vector.load %arg5[%c0_14, %c0_15] : memref<128x128xbf16, #tpu.memory_space<vmem>>, vector<128x128xbf16>
      %cst_16 = arith.constant dense<0.000000e+00> : vector<128x128xf32>
      %16 = tpu.matmul %14, %15, %cst_16 {dimension_numbers = #tpu.dot_dimension_numbers<[1], [0], [0], [1], [0, 0, 1, 1], [], []>} : vector<128x128xbf16>, vector<128x128xbf16>, vector<128x128xf32> -> vector<128x128xf32>
      %c0_17 = arith.constant 0 : index
      %c0_18 = arith.constant 0 : index
      %17 = vector.load %arg7[%c0_17, %c0_18] : memref<1x128xf32, #tpu.memory_space<vmem>>, vector<1x128xf32>
      %18 = vector.broadcast %17 : vector<1x128xf32> to vector<128x128xf32>
      %19 = arith.addf %16, %18 : vector<128x128xf32>
      %c0_19 = arith.constant 0 : index
      %c0_20 = arith.constant 0 : index
      %20 = vector.load %arg10[%c0_19, %c0_20] : memref<128x128xf32, #tpu.memory_space<vmem>>, vector<128x128xf32>
      tpu.vector_store %arg10[%c0_19, %c0_20], %19 {strides = array<i32>} : memref<128x128xf32, #tpu.memory_space<vmem>>, vector<128x128xf32>,
    } else {
    }
    %c0 = arith.constant 0 : index
    %c0_1 = arith.constant 0 : index
    %3 = vector.load %arg9[%c0, %c0_1] : memref<128x128xf32, #tpu.memory_space<vmem>>, vector<128x128xf32>
    %c0_2 = arith.constant 0 : index
    %c0_3 = arith.constant 0 : index
    %4 = vector.load %arg2[%c0_2, %c0_3] : memref<128x128xbf16, #tpu.memory_space<vmem>>, vector<128x128xbf16>
    %c0_4 = arith.constant 0 : index
    %c0_5 = arith.constant 0 : index
    %5 = vector.load %arg3[%c0_4, %c0_5] : memref<128x128xbf16, #tpu.memory_space<vmem>>, vector<128x128xbf16>
    %cst = arith.constant dense<0.000000e+00> : vector<128x128xf32>
    %6 = tpu.matmul %4, %5, %cst {dimension_numbers = #tpu.dot_dimension_numbers<[1], [0], [0], [1], [0, 0, 1, 1], [], []>} : vector<128x128xbf16>, vector<128x128xbf16>, vector<128x128xf32> -> vector<128x128xf32>
    %7 = arith.addf %3, %6 : vector<128x128xf32>
    %c0_6 = arith.constant 0 : index
    %c0_7 = arith.constant 0 : index
    %8 = vector.load %arg9[%c0_6, %c0_7] : memref<128x128xf32, #tpu.memory_space<vmem>>, vector<128x128xf32>
    tpu.vector_store %arg9[%c0_6, %c0_7], %7 {strides = array<i32>} : memref<128x128xf32, #tpu.memory_space<vmem>>, vector<128x128xf32>,
    %c2_i32 = arith.constant 2 : i32
    %9 = arith.cmpi eq, %arg1, %c2_i32 : i32
    %10 = arith.extui %9 : i1 to i32
    %c0_i32_8 = arith.constant 0 : i32
    %11 = arith.cmpi ne, %10, %c0_i32_8 : i32
    scf.if %11 {
      %c0_9 = arith.constant 0 : index
      %c0_10 = arith.constant 0 : index
      %12 = vector.load %arg9[%c0_9, %c0_10] : memref<128x128xf32, #tpu.memory_space<vmem>>, vector<128x128xf32>
      %13 = vector.extract_strided_slice %12 {offsets = [0, 16], sizes = [128, 1], strides = [1, 1]} : vector<128x128xf32> to vector<128x1xf32>
      %cst_11 = arith.constant 0.000000e+00 : f32
      %14 = vector.broadcast %cst_11 : f32 to vector<128x1xf32>
      %15 = arith.cmpf ogt, %13, %14 : vector<128x1xf32>
      %cst_12 = arith.constant 1.000000e+00 : f32
      %16 = vector.broadcast %cst_12 : f32 to vector<128x1xf32>
      %17 = arith.maximumf %13, %16 : vector<128x1xf32>
      %cst_13 = arith.constant 1.000000e+00 : f32
      %18 = vector.broadcast %cst_13 : f32 to vector<128x1xf32>
      %19 = arith.divf %18, %17 : vector<128x1xf32>
      %cst_14 = arith.constant 0.000000e+00 : f32
      %20 = vector.broadcast %cst_14 : f32 to vector<128x1xf32>
      %21 = arith.select %15, %19, %20 : vector<128x1xi1>, vector<128x1xf32>
      %22 = vector.broadcast %21 : vector<128x1xf32> to vector<128x128xf32>
      %23 = arith.mulf %12, %22 : vector<128x128xf32>
      %c0_15 = arith.constant 0 : index
      %c0_16 = arith.constant 0 : index
      %24 = vector.load %arg10[%c0_15, %c0_16] : memref<128x128xf32, #tpu.memory_space<vmem>>, vector<128x128xf32>
      %25 = arith.truncf %23 : vector<128x128xf32> to vector<128x128xbf16>
      %c0_17 = arith.constant 0 : index
      %c0_18 = arith.constant 0 : index
      %26 = vector.load %arg6[%c0_17, %c0_18] : memref<128x128xbf16, #tpu.memory_space<vmem>>, vector<128x128xbf16>
      %cst_19 = arith.constant dense<0.000000e+00> : vector<128x128xf32>
      %27 = tpu.matmul %25, %26, %cst_19 {dimension_numbers = #tpu.dot_dimension_numbers<[1], [0], [0], [1], [0, 0, 1, 1], [], []>} : vector<128x128xbf16>, vector<128x128xbf16>, vector<128x128xf32> -> vector<128x128xf32>
      %28 = arith.addf %24, %27 : vector<128x128xf32>
      %cst_20 = arith.constant 0.000000e+00 : f32
      %29 = vector.broadcast %cst_20 : f32 to vector<128x128xf32>
      %30 = arith.maximumf %28, %29 : vector<128x128xf32>
      %31 = tpu.iota {dimensions = array<i32: 1>} : vector<128x128xi32>
      %c32_i32 = arith.constant 32 : i32
      %32 = vector.broadcast %c32_i32 : i32 to vector<128x128xi32>
      %33 = arith.cmpi eq, %31, %32 : vector<128x128xi32>
      %cst_21 = arith.constant 1.000000e+00 : f32
      %34 = vector.broadcast %cst_21 : f32 to vector<128x128xf32>
      %35 = arith.select %33, %34, %30 : vector<128x128xi1>, vector<128x128xf32>
      %36 = arith.truncf %35 : vector<128x128xf32> to vector<128x128xbf16>
      %c0_22 = arith.constant 0 : index
      %c0_23 = arith.constant 0 : index
      %37 = vector.load %arg8[%c0_22, %c0_23] : memref<128x128xbf16, #tpu.memory_space<vmem>>, vector<128x128xbf16>
      tpu.vector_store %arg8[%c0_22, %c0_23], %36 {strides = array<i32>} : memref<128x128xbf16, #tpu.memory_space<vmem>>, vector<128x128xbf16>,
    } else {
    }
    return
  }
  func.func @transform_0(%arg0: i32, %arg1: i32) -> (i32, i32) {
    %c0_i32 = arith.constant 0 : i32
    return %arg0, %arg1 : i32, i32
  }
  func.func @transform_1(%arg0: i32, %arg1: i32) -> (i32, i32) {
    %c0_i32 = arith.constant 0 : i32
    %c0_i32_0 = arith.constant 0 : i32
    return %arg1, %c0_i32 : i32, i32
  }
  func.func @transform_2(%arg0: i32, %arg1: i32) -> (i32, i32) {
    %c0_i32 = arith.constant 0 : i32
    %c0_i32_0 = arith.constant 0 : i32
    return %arg0, %c0_i32 : i32, i32
  }
  func.func @transform_3(%arg0: i32, %arg1: i32) -> (i32, i32) {
    %c0_i32 = arith.constant 0 : i32
    %c0_i32_0 = arith.constant 0 : i32
    %c0_i32_1 = arith.constant 0 : i32
    return %c0_i32, %c0_i32_0 : i32, i32
  }
  func.func @transform_4(%arg0: i32, %arg1: i32) -> (i32, i32) {
    %c0_i32 = arith.constant 0 : i32
    %c0_i32_0 = arith.constant 0 : i32
    %c0_i32_1 = arith.constant 0 : i32
    return %c0_i32, %c0_i32_0 : i32, i32
  }
  func.func @transform_5(%arg0: i32, %arg1: i32) -> (i32, i32) {
    %c0_i32 = arith.constant 0 : i32
    %c0_i32_0 = arith.constant 0 : i32
    %c0_i32_1 = arith.constant 0 : i32
    return %c0_i32, %c0_i32_0 : i32, i32
  }
  func.func @transform_6(%arg0: i32, %arg1: i32) -> (i32, i32) {
    %c0_i32 = arith.constant 0 : i32
    %c0_i32_0 = arith.constant 0 : i32
    return %arg0, %c0_i32 : i32, i32
  }
}

</mosaic_0001>

<llo_original>
// kernel: tpu_custom_call.1
$region0: #{tpu_custom_call.1}
  #allocation0 [shape = 'u32[]', space=smem, size = 0x4, offset = 0x4, fixed_abs, tag = 'smem constant byte address 0x4 - core index']
  #allocation1 [shape = 'u32[144,128]{1,0:T(1,128)}', space=vmem, size = 0x12000, scoped, tag = 'internal scratch']
  #allocation2 [shape = 'f32[128,128]{1,0:T(8,128)}', space=vmem, size = 0x10000, scoped, tag = 'scratch operand']
  #allocation3 [shape = 'f32[128,128]{1,0:T(8,128)}', space=vmem, size = 0x10000, scoped, tag = 'scratch operand']
  %s0 = inlined_call_operand.hbm [shape: bf16[384,384], index: 0, kind: input, shape index: {}]
  %s1 = inlined_call_operand.hbm [shape: bf16[384,128], index: 1, kind: input, shape index: {}]
  %s2 = inlined_call_operand.hbm [shape: bf16[384,128], index: 2, kind: input, shape index: {}]
  %s3 = inlined_call_operand.hbm [shape: bf16[128,128], index: 3, kind: input, shape index: {}]
  %s4 = inlined_call_operand.hbm [shape: bf16[128,128], index: 4, kind: input, shape index: {}]
  %s5 = inlined_call_operand.vmem [shape: f32[1,128], index: 5, kind: input, shape index: {}]
  %s6 = inlined_call_operand.hbm [shape: bf16[384,128], index: 6, kind: output, shape index: {}]
  %s7 = sld [smem:[#allocation0]]
  $region85: #{tpu_custom_call.1} parent=0
    _
  %s9 = ssub.s32 1, %s7
  %s10 = scalar_select 0, %s9, %s7
  $region1: #{tpu_custom_call.1} parent=0
    #allocation4 [shape = 'u8[65536]{0}', space=vmem, size = 0x10000, scoped, tag = 'input window, operand 0']
    #allocation5 [shape = 's32[2]{0}', space=sflag, size = 0x8, scoped, tag = 'scoped memory for tpu_custom_call.1']
    #allocation6 [shape = 's32[2]{0}', space=sflag, size = 0x8, scoped, tag = 'scoped memory for tpu_custom_call.1']
    #allocation7 [shape = 'u8[65536]{0}', space=vmem, size = 0x10000, scoped, tag = 'input window, operand 1']
    #allocation8 [shape = 's32[2]{0}', space=sflag, size = 0x8, scoped, tag = 'scoped memory for tpu_custom_call.1']
    #allocation9 [shape = 'u8[65536]{0}', space=vmem, size = 0x10000, scoped, tag = 'input window, operand 2']
    #allocation10 [shape = 'u8[32768]{0}', space=vmem, size = 0x8000, scoped, tag = 'input window, operand 3, single buffered']
    #allocation11 [shape = 's32[1]{0}', space=sflag, size = 0x4, scoped, tag = 'scoped memory for tpu_custom_call.1']
    #allocation12 [shape = 'u8[32768]{0}', space=vmem, size = 0x8000, scoped, tag = 'input window, operand 4, single buffered']
    #allocation13 [shape = 'u8[65536]{0}', space=vmem, size = 0x10000, scoped, tag = 'output window, operand 0']
    %11 = vsyncpa [#allocation5], 0
    %s12 = scalar_lea.sflag [#allocation5], 1
    %13 = vsyncpa %s12, 0
    %14 = vsyncpa [#allocation8], 0
    %s15 = scalar_lea.sflag [#allocation8], 1
    %16 = vsyncpa %s15, 0
    %17 = vsyncpa [#allocation11], 0
    %18 = vsyncpa [#allocation6], 0
    %s19 = scalar_lea.sflag [#allocation6], 1
    %20 = vsyncpa %s19, 0
    loop: start=0, step=1, limit=11
    $region2: #{tpu_custom_call.1} parent=1 // loop_pre_header
      _
    $region3: #{tpu_custom_call.1} parent=1 // loop_header
      %s22 = sphi 0, %s26
      %p23 = scmp.ge.s32.totalorder %s22, 11
      %s29 = sphi 0, %s41
      %s30 = sphi 0, %s37
      %s31 = sphi 0, %s29
      %s32 = sphi 0, %s30
      %s33 = sphi 0, %s31
      %s34 = sphi 0, %s32
      %s46 = sphi 0, %s48
      %s49 = sphi 0, %s46
      %s50 = sphi 0, %s49
      %s66 = sphi 0, %s50
      %s72 = sphi 0, %s74
      %s75 = sphi 0, %s72
      %s76 = sphi 0, %s75
      %s92 = sphi 0, %s76
      %s98 = sphi 0, %s100
      %s101 = sphi 0, %s98
      %s102 = sphi 0, %s101
      %s118 = sphi 0, %s102
      %s122 = sphi 0, %s122
      %s124 = sphi 0, %s122
      %s125 = sphi 0, %s124
      %s139 = sphi 0, %s125
      %s143 = sphi 0, %s143
      %s145 = sphi 0, %s143
      %s146 = sphi 0, %s145
      %s160 = sphi 0, %s146
      %s164 = sphi 0, %s164
      %s166 = sphi 0, %s164
      %s167 = sphi 0, %s166
      %s181 = sphi 0, %s167
      %s187 = sphi 0, %s189
      %s190 = sphi 0, %s187
      %s191 = sphi 0, %s190
      %s207 = sphi 0, %s191
    $region4: #{tpu_custom_call.1} parent=1 // loop_header_branch
      %25 = sbr.rel (%p23) target = $region8
    $region5: #{tpu_custom_call.1} parent=1 // loop_body
      %s27 = ssub.s32 %s22, 1
      %s28 = ssub.s32 %s22, 2
      %s35 = sadd.s32 1, %s30
      %p36 = scmp.ge.s32.totalorder %s35, 3
      %s37 = scalar_select %p36, 0, %s35
      %s38 = sadd.s32 1, %s29
      %s39 = scalar_select %p36, %s38, %s29
      %p40 = scmp.ge.s32.totalorder %s39, 3
      %s41 = scalar_select %p40, 0, %s39
      %s42 = ssub.s32 %s29, %s41
      %s43 = ssub.s32 %s30, %s37
      %s44 = sor.u32 %s42, %s43
      %p45 = scmp.eq.s32.totalorder %s44, 0
      %s47 = sadd.s32 %s46, 1
      %s48 = scalar_select %p45, %s46, %s47
      %p51 = pneg %p45
      %p52 = scmp.eq.s32.totalorder %s22, 8
      %p53 = por %p51, %p52
      %p54 = scmp.ne.s32.totalorder %s46, %s49
      %p55 = scmp.eq.s32.totalorder %s22, 0
      %p56 = por %p54, %p55
      %p57 = scmp.ne.s32.totalorder %s46, %s49
      %p58 = scmp.eq.s32.totalorder %s27, 8
      %p59 = por %p57, %p58
      %p60 = scmp.ne.s32.totalorder %s49, %s50
      %p61 = scmp.eq.s32.totalorder %s27, 0
      %p62 = por %p60, %p61
      %p63 = scmp.ne.s32.totalorder %s49, %s50
      %p64 = scmp.eq.s32.totalorder %s28, 8
      %p65 = por %p63, %p64
      %p67 = scmp.ne.s32.totalorder %s50, %s66
      %p68 = scmp.eq.s32.totalorder %s28, 0
      %p69 = por %p67, %p68
      %s70 = ssub.s32 %s30, %s37
      %p71 = scmp.eq.s32.totalorder %s70, 0
      %s73 = sadd.s32 %s72, 1
      %s74 = scalar_select %p71, %s72, %s73
      %p77 = pneg %p71
      %p78 = scmp.eq.s32.totalorder %s22, 8
      %p79 = por %p77, %p78
      %p80 = scmp.ne.s32.totalorder %s72, %s75
      %p81 = scmp.eq.s32.totalorder %s22, 0
      %p82 = por %p80, %p81
      %p83 = scmp.ne.s32.totalorder %s72, %s75
      %p84 = scmp.eq.s32.totalorder %s27, 8
      %p85 = por %p83, %p84
      %p86 = scmp.ne.s32.totalorder %s75, %s76
      %p87 = scmp.eq.s32.totalorder %s27, 0
      %p88 = por %p86, %p87
      %p89 = scmp.ne.s32.totalorder %s75, %s76
      %p90 = scmp.eq.s32.totalorder %s28, 8
      %p91 = por %p89, %p90
      %p93 = scmp.ne.s32.totalorder %s76, %s92
      %p94 = scmp.eq.s32.totalorder %s28, 0
      %p95 = por %p93, %p94
      %s96 = ssub.s32 %s29, %s41
      %p97 = scmp.eq.s32.totalorder %s96, 0
      %s99 = sadd.s32 %s98, 1
      %s100 = scalar_select %p97, %s98, %s99
      %p103 = pneg %p97
      %p104 = scmp.eq.s32.totalorder %s22, 8
      %p105 = por %p103, %p104
      %p106 = scmp.ne.s32.totalorder %s98, %s101
      %p107 = scmp.eq.s32.totalorder %s22, 0
      %p108 = por %p106, %p107
      %p109 = scmp.ne.s32.totalorder %s98, %s101
      %p110 = scmp.eq.s32.totalorder %s27, 8
      %p111 = por %p109, %p110
      %p112 = scmp.ne.s32.totalorder %s101, %s102
      %p113 = scmp.eq.s32.totalorder %s27, 0
      %p114 = por %p112, %p113
      %p115 = scmp.ne.s32.totalorder %s101, %s102
      %p116 = scmp.eq.s32.totalorder %s28, 8
      %p117 = por %p115, %p116
      %p119 = scmp.ne.s32.totalorder %s102, %s118
      %p120 = scmp.eq.s32.totalorder %s28, 0
      %p121 = por %p119, %p120
      %s123 = sadd.s32 %s122, 1
      %p126 = scmp.eq.s32.totalorder %s22, 8
      %p127 = scmp.ne.s32.totalorder %s122, %s124
      %p128 = scmp.eq.s32.totalorder %s22, 0
      %p129 = por %p127, %p128
      %p130 = scmp.ne.s32.totalorder %s122, %s124
      %p131 = scmp.eq.s32.totalorder %s27, 8
      %p132 = por %p130, %p131
      %p133 = scmp.ne.s32.totalorder %s124, %s125
      %p134 = scmp.eq.s32.totalorder %s27, 0
      %p135 = por %p133, %p134
      %p136 = scmp.ne.s32.totalorder %s124, %s125
      %p137 = scmp.eq.s32.totalorder %s28, 8
      %p138 = por %p136, %p137
      %p140 = scmp.ne.s32.totalorder %s125, %s139
      %p141 = scmp.eq.s32.totalorder %s28, 0
      %p142 = por %p140, %p141
      %s144 = sadd.s32 %s143, 1
      %p147 = scmp.eq.s32.totalorder %s22, 8
      %p148 = scmp.ne.s32.totalorder %s143, %s145
      %p149 = scmp.eq.s32.totalorder %s22, 0
      %p150 = por %p148, %p149
      %p151 = scmp.ne.s32.totalorder %s143, %s145
      %p152 = scmp.eq.s32.totalorder %s27, 8
      %p153 = por %p151, %p152
      %p154 = scmp.ne.s32.totalorder %s145, %s146
      %p155 = scmp.eq.s32.totalorder %s27, 0
      %p156 = por %p154, %p155
      %p157 = scmp.ne.s32.totalorder %s145, %s146
      %p158 = scmp.eq.s32.totalorder %s28, 8
      %p159 = por %p157, %p158
      %p161 = scmp.ne.s32.totalorder %s146, %s160
      %p162 = scmp.eq.s32.totalorder %s28, 0
      %p163 = por %p161, %p162
      %s165 = sadd.s32 %s164, 1
      %p168 = scmp.eq.s32.totalorder %s22, 8
      %p169 = scmp.ne.s32.totalorder %s164, %s166
      %p170 = scmp.eq.s32.totalorder %s22, 0
      %p171 = por %p169, %p170
      %p172 = scmp.ne.s32.totalorder %s164, %s166
      %p173 = scmp.eq.s32.totalorder %s27, 8
      %p174 = por %p172, %p173
      %p175 = scmp.ne.s32.totalorder %s166, %s167
      %p176 = scmp.eq.s32.totalorder %s27, 0
      %p177 = por %p175, %p176
      %p178 = scmp.ne.s32.totalorder %s166, %s167
      %p179 = scmp.eq.s32.totalorder %s28, 8
      %p180 = por %p178, %p179
      %p182 = scmp.ne.s32.totalorder %s167, %s181
      %p183 = scmp.eq.s32.totalorder %s28, 0
      %p184 = por %p182, %p183
      %s185 = ssub.s32 %s29, %s41
      %p186 = scmp.eq.s32.totalorder %s185, 0
      %s188 = sadd.s32 %s187, 1
      %s189 = scalar_select %p186, %s187, %s188
      %p192 = pneg %p186
      %p193 = scmp.eq.s32.totalorder %s22, 8
      %p194 = por %p192, %p193
      %p195 = scmp.ne.s32.totalorder %s187, %s190
      %p196 = scmp.eq.s32.totalorder %s22, 0
      %p197 = por %p195, %p196
      %p198 = scmp.ne.s32.totalorder %s187, %s190
      %p199 = scmp.eq.s32.totalorder %s27, 8
      %p200 = por %p198, %p199
      %p201 = scmp.ne.s32.totalorder %s190, %s191
      %p202 = scmp.eq.s32.totalorder %s27, 0
      %p203 = por %p201, %p202
      %p204 = scmp.ne.s32.totalorder %s190, %s191
      %p205 = scmp.eq.s32.totalorder %s28, 8
      %p206 = por %p204, %p205
      %p208 = scmp.ne.s32.totalorder %s191, %s207
      %p209 = scmp.eq.s32.totalorder %s28, 0
      %p210 = por %p208, %p209
      %p211 = scmp.le.s32.totalorder 1, %s22
      %p212 = scmp.lt.s32.totalorder %s22, 10
      %p213 = pnand %p211, %p212
      %p214 = pneg %p213
      // Predicated region
      $region9: #{tpu_custom_call.1} parent=5 // pred_check
        _
      $region10: #{tpu_custom_call.1} parent=5 // pred_check_branch
        %216 = sbr.rel (%p213) target = $region12
      $region11: #{tpu_custom_call.1} parent=5 // pred_region
        %s217 = ssub.s32 %s22, 1
        // Predicated region
        $region13: #{tpu_custom_call.1} parent=11 // pred_check
          %p218 = pneg %p135
        $region14: #{tpu_custom_call.1} parent=11 // pred_check_branch
          %220 = sbr.rel (%p218) target = $region16
        $region15: #{tpu_custom_call.1} parent=11 // pred_region
          %s222 = ssub.s32 1024, 1024
          %223 = vsyncadd [#allocation11], %s222
          %s224 = sshll.u32 [#allocation10], 4
          %s225 = int_to_ptr.vmem [resolvable:$true] %s224
          %230 = dma.hbm_to_vmem [thread:$0]  %s3, 1024, %s225, [#allocation11], 64, 64, 4
        $region16: #{tpu_custom_call.1} parent=11 // pred_fallthru
          _
        // Predicated region
        $region17: #{tpu_custom_call.1} parent=11 // pred_check
          %p231 = pneg %p156
        $region18: #{tpu_custom_call.1} parent=11 // pred_check_branch
          %233 = sbr.rel (%p231) target = $region20
        $region19: #{tpu_custom_call.1} parent=11 // pred_region
          %s235 = ssub.s32 1024, 1024
          %236 = vsyncadd [#allocation11], %s235
          %s237 = sshll.u32 [#allocation12], 4
          %s238 = int_to_ptr.vmem [resolvable:$true] %s237
          %243 = dma.hbm_to_vmem [thread:$0]  %s4, 1024, %s238, [#allocation11], 64, 64, 4
        $region20: #{tpu_custom_call.1} parent=11 // pred_fallthru
          _
        // Predicated region
        $region21: #{tpu_custom_call.1} parent=11 // pred_check
          %p244 = pneg %p177
        $region22: #{tpu_custom_call.1} parent=11 // pred_check_branch
          %246 = sbr.rel (%p244) target = $region24
        $region23: #{tpu_custom_call.1} parent=11 // pred_region
          _
        $region24: #{tpu_custom_call.1} parent=11 // pred_fallthru
          _
      $region12: #{tpu_custom_call.1} parent=5 // pred_fallthru
        _
      %p247 = scmp.lt.s32.totalorder %s22, 9
      // Predicated region
      $region25: #{tpu_custom_call.1} parent=5 // pred_check
        %p248 = pneg %p247
      $region26: #{tpu_custom_call.1} parent=5 // pred_check_branch
        %250 = sbr.rel (%p248) target = $region28
      $region27: #{tpu_custom_call.1} parent=5 // pred_region
        // Predicated region
        $region29: #{tpu_custom_call.1} parent=27 // pred_check
          %p251 = pneg %p56
        $region30: #{tpu_custom_call.1} parent=27 // pred_check_branch
          %253 = sbr.rel (%p251) target = $region32
        $region31: #{tpu_custom_call.1} parent=27 // pred_region
          %s254 = sand.u32 %s46, 1
          %s255 = scalar_lea.sflag [#allocation5], %s254
          %s256 = sand.u32 %s46, 1
          %s257 = smul.addr %s256, 64
          %s258 = scalar_lea.vmem [#allocation4], %s257
          %s259 = smul.u32 16, %s29
          %s261 = ssub.s32 1024, 1024
          %262 = vsyncadd %s255, %s261
          %s263 = smul.addr %s259, 3
          %s264 = sadd.s32 %s30, %s263
          %s265 = smul.addr %s264, 64
          %s266 = scalar_lea.hbm %s0, %s265
          %s267 = sshll.u32 %s258, 4
          %s268 = int_to_ptr.vmem [resolvable:$true] %s267
          %273 = dma.hbm_to_vmem [thread:$0]  %s266, 1024, %s268, %s255, 192, 64, 4
        $region32: #{tpu_custom_call.1} parent=27 // pred_fallthru
          _
        // Predicated region
        $region33: #{tpu_custom_call.1} parent=27 // pred_check
          %p274 = pneg %p82
        $region34: #{tpu_custom_call.1} parent=27 // pred_check_branch
          %276 = sbr.rel (%p274) target = $region36
        $region35: #{tpu_custom_call.1} parent=27 // pred_region
          %s277 = sand.u32 %s22, 1
          %s278 = scalar_lea.sflag [#allocation8], %s277
          %s279 = sand.u32 %s72, 1
          %s280 = smul.addr %s279, 64
          %s281 = scalar_lea.vmem [#allocation7], %s280
          %s282 = smul.u32 16, %s30
          %s284 = ssub.s32 1024, 1024
          %285 = vsyncadd %s278, %s284
          %s286 = smul.addr %s282, 64
          %s287 = scalar_lea.hbm %s1, %s286
          %s288 = sshll.u32 %s281, 4
          %s289 = int_to_ptr.vmem [resolvable:$true] %s288
          %294 = dma.hbm_to_vmem [thread:$0]  %s287, 1024, %s289, %s278, 64, 64, 4
        $region36: #{tpu_custom_call.1} parent=27 // pred_fallthru
          _
        // Predicated region
        $region37: #{tpu_custom_call.1} parent=27 // pred_check
          %p295 = pneg %p108
        $region38: #{tpu_custom_call.1} parent=27 // pred_check_branch
          %297 = sbr.rel (%p295) target = $region40
        $region39: #{tpu_custom_call.1} parent=27 // pred_region
          %s298 = sand.u32 %s22, 1
          %s299 = scalar_lea.sflag [#allocation8], %s298
          %s300 = sand.u32 %s98, 1
          %s301 = smul.addr %s300, 64
          %s302 = scalar_lea.vmem [#allocation9], %s301
          %s303 = smul.u32 16, %s29
          %s305 = ssub.s32 1024, 1024
          %306 = vsyncadd %s299, %s305
          %s307 = smul.addr %s303, 64
          %s308 = scalar_lea.hbm %s2, %s307
          %s309 = sshll.u32 %s302, 4
          %s310 = int_to_ptr.vmem [resolvable:$true] %s309
          %315 = dma.hbm_to_vmem [thread:$0]  %s308, 1024, %s310, %s299, 64, 64, 4
        $region40: #{tpu_custom_call.1} parent=27 // pred_fallthru
          _
      $region28: #{tpu_custom_call.1} parent=5 // pred_fallthru
        _
      %p316 = scmp.le.s32.totalorder 1, %s22
      %p317 = scmp.lt.s32.totalorder %s22, 10
      %p318 = pnand %p316, %p317
      %p319 = pneg %p318
      // Predicated region
      $region41: #{tpu_custom_call.1} parent=5 // pred_check
        _
      $region42: #{tpu_custom_call.1} parent=5 // pred_check_branch
        %321 = sbr.rel (%p318) target = $region44
      $region43: #{tpu_custom_call.1} parent=5 // pred_region
        %s322 = ssub.s32 %s22, 1
        %s323 = sand.u32 %s49, 1
        %s324 = scalar_lea.sflag [#allocation5], %s323
        %s325 = sand.u32 %s49, 1
        %s326 = smul.addr %s325, 64
        %s327 = scalar_lea.vmem [#allocation4], %s326
        // Predicated region
        $region45: #{tpu_custom_call.1} parent=43 // pred_check
          %p328 = pneg %p62
        $region46: #{tpu_custom_call.1} parent=43 // pred_check_branch
          %330 = sbr.rel (%p328) target = $region48
        $region47: #{tpu_custom_call.1} parent=43 // pred_region
          %331 = dma.done %s324, 1024
        $region48: #{tpu_custom_call.1} parent=43 // pred_fallthru
          _
        %s332 = sand.u32 %s27, 1
        %s333 = scalar_lea.sflag [#allocation8], %s332
        %s334 = sand.u32 %s75, 1
        %s335 = smul.addr %s334, 64
        %s336 = scalar_lea.vmem [#allocation7], %s335
        // Predicated region
        $region49: #{tpu_custom_call.1} parent=43 // pred_check
          %p337 = pneg %p88
        $region50: #{tpu_custom_call.1} parent=43 // pred_check_branch
          %339 = sbr.rel (%p337) target = $region52
        $region51: #{tpu_custom_call.1} parent=43 // pred_region
          %340 = dma.done %s333, 1024
        $region52: #{tpu_custom_call.1} parent=43 // pred_fallthru
          _
        %s341 = sand.u32 %s27, 1
        %s342 = scalar_lea.sflag [#allocation8], %s341
        %s343 = sand.u32 %s101, 1
        %s344 = smul.addr %s343, 64
        %s345 = scalar_lea.vmem [#allocation9], %s344
        // Predicated region
        $region53: #{tpu_custom_call.1} parent=43 // pred_check
          %p346 = pneg %p114
        $region54: #{tpu_custom_call.1} parent=43 // pred_check_branch
          %348 = sbr.rel (%p346) target = $region56
        $region55: #{tpu_custom_call.1} parent=43 // pred_region
          %349 = dma.done %s342, 1024
        $region56: #{tpu_custom_call.1} parent=43 // pred_fallthru
          _
        // Predicated region
        $region57: #{tpu_custom_call.1} parent=43 // pred_check
          %p350 = pneg %p135
        $region58: #{tpu_custom_call.1} parent=43 // pred_check_branch
          %352 = sbr.rel (%p350) target = $region60
        $region59: #{tpu_custom_call.1} parent=43 // pred_region
          %353 = dma.done [#allocation11], 1024
        $region60: #{tpu_custom_call.1} parent=43 // pred_fallthru
          _
        // Predicated region
        $region61: #{tpu_custom_call.1} parent=43 // pred_check
          %p354 = pneg %p156
        $region62: #{tpu_custom_call.1} parent=43 // pred_check_branch
          %356 = sbr.rel (%p354) target = $region64
        $region63: #{tpu_custom_call.1} parent=43 // pred_region
          %357 = dma.done [#allocation11], 1024
        $region64: #{tpu_custom_call.1} parent=43 // pred_fallthru
          _
        %s358 = sand.u32 %s49, 1
        %s359 = scalar_lea.sflag [#allocation5], %s358
        %s360 = sand.u32 %s49, 1
        %s361 = smul.addr %s360, 64
        %s362 = scalar_lea.vmem [#allocation4], %s361
        %p363 = pneg %p62
        %p364 = pneg %p59
        %s365 = sand.u32 %s27, 1
        %s366 = scalar_lea.sflag [#allocation8], %s365
        %s367 = sand.u32 %s75, 1
        %s368 = smul.addr %s367, 64
        %s369 = scalar_lea.vmem [#allocation7], %s368
        %p370 = pneg %p88
        %p371 = pneg %p85
        %s372 = sand.u32 %s27, 1
        %s373 = scalar_lea.sflag [#allocation8], %s372
        %s374 = sand.u32 %s101, 1
        %s375 = smul.addr %s374, 64
        %s376 = scalar_lea.vmem [#allocation9], %s375
        %p377 = pneg %p114
        %p378 = pneg %p111
        %p379 = pneg %p135
        %p380 = pneg %p132
        %p381 = pneg %p156
        %p382 = pneg %p153
        %p383 = pneg %p177
        %p384 = pneg %p174
        %p385 = pneg %p203
        %p386 = pneg %p200
        %s387 = sand.u32 %s190, 1
        %s388 = scalar_lea.sflag [#allocation6], %s387
        %s389 = sand.u32 %s190, 1
        %s390 = smul.addr %s389, 64
        %s391 = scalar_lea.vmem [#allocation13], %s390
        %s392 = smul.u32 16, %s31
        %s393 = smul.u32 16, %s32
        %s394 = smul.u32 16, %s31
        %s395 = smul.u32 16, %s31
        %p397 = scmp.eq.s32.totalorder %s32, 0
        // Predicated region
        $region65: #{tpu_custom_call.1} parent=43 // pred_check
          %p398 = pneg %p397
        $region66: #{tpu_custom_call.1} parent=43 // pred_check_branch
          %400 = sbr.rel (%p398) target = $region68
        $region67: #{tpu_custom_call.1} parent=43 // pred_region
          %401 = vst [vmem:[#allocation2] sm:$0xff] 0.0
          %402 = vst [vmem:[#allocation2 + $0x8] sm:$0xff] 0.0
          %403 = vst [vmem:[#allocation2 + $0x10] sm:$0xff] 0.0
          %404 = vst [vmem:[#allocation2 + $0x18] sm:$0xff] 0.0
          %405 = vst [vmem:[#allocation2 + $0x20] sm:$0xff] 0.0
          %406 = vst [vmem:[#allocation2 + $0x28] sm:$0xff] 0.0
          %407 = vst [vmem:[#allocation2 + $0x30] sm:$0xff] 0.0
          %408 = vst [vmem:[#allocation2 + $0x38] sm:$0xff] 0.0
          %409 = vst [vmem:[#allocation2 + $0x40] sm:$0xff] 0.0
          %410 = vst [vmem:[#allocation2 + $0x48] sm:$0xff] 0.0
          %411 = vst [vmem:[#allocation2 + $0x50] sm:$0xff] 0.0
          %412 = vst [vmem:[#allocation2 + $0x58] sm:$0xff] 0.0
          %413 = vst [vmem:[#allocation2 + $0x60] sm:$0xff] 0.0
          %414 = vst [vmem:[#allocation2 + $0x68] sm:$0xff] 0.0
          %415 = vst [vmem:[#allocation2 + $0x70] sm:$0xff] 0.0
          %416 = vst [vmem:[#allocation2 + $0x78] sm:$0xff] 0.0
          %v417 = vld [vmem:[%s345] sm:$0xf]
          %v418 = vld [vmem:[%s345 + $0x4] sm:$0xf]
          %v419 = vld [vmem:[%s345 + $0x8] sm:$0xf]
          %v420 = vld [vmem:[%s345 + $0xc] sm:$0xf]
          %v421 = vld [vmem:[%s345 + $0x10] sm:$0xf]
          %v422 = vld [vmem:[%s345 + $0x14] sm:$0xf]
          %v423 = vld [vmem:[%s345 + $0x18] sm:$0xf]
          %v424 = vld [vmem:[%s345 + $0x1c] sm:$0xf]
          %v425 = vld [vmem:[%s345 + $0x20] sm:$0xf]
          %v426 = vld [vmem:[%s345 + $0x24] sm:$0xf]
          %v427 = vld [vmem:[%s345 + $0x28] sm:$0xf]
          %v428 = vld [vmem:[%s345 + $0x2c] sm:$0xf]
          %v429 = vld [vmem:[%s345 + $0x30] sm:$0xf]
          %v430 = vld [vmem:[%s345 + $0x34] sm:$0xf]
          %v431 = vld [vmem:[%s345 + $0x38] sm:$0xf]
          %v432 = vld [vmem:[%s345 + $0x3c] sm:$0xf]
          %v433 = vld [vmem:[#allocation10] sm:$0xf]
          %v434 = vld [vmem:[#allocation10 + $0x4] sm:$0xf]
          %v435 = vld [vmem:[#allocation10 + $0x8] sm:$0xf]
          %v436 = vld [vmem:[#allocation10 + $0xc] sm:$0xf]
          %v437 = vld [vmem:[#allocation10 + $0x10] sm:$0xf]
          %v438 = vld [vmem:[#allocation10 + $0x14] sm:$0xf]
          %v439 = vld [vmem:[#allocation10 + $0x18] sm:$0xf]
          %v440 = vld [vmem:[#allocation10 + $0x1c] sm:$0xf]
          %v441 = vld [vmem:[#allocation10 + $0x20] sm:$0xf]
          %v442 = vld [vmem:[#allocation10 + $0x24] sm:$0xf]
          %v443 = vld [vmem:[#allocation10 + $0x28] sm:$0xf]
          %v444 = vld [vmem:[#allocation10 + $0x2c] sm:$0xf]
          %v445 = vld [vmem:[#allocation10 + $0x30] sm:$0xf]
          %v446 = vld [vmem:[#allocation10 + $0x34] sm:$0xf]
          %v447 = vld [vmem:[#allocation10 + $0x38] sm:$0xf]
          %v448 = vld [vmem:[#allocation10 + $0x3c] sm:$0xf]
          %v449 = vld [vmem:[%s5] sm:$0x1]
          %v451 = vlaneseq
          %v452 = vshrl.u32 %v451, 7
          %v453 = vsub.s32 0, %v452
          %v454 = vrot.slane %v449, %v453
          %v472 = vunpack.c.l.b16 %v417
          %v473 = vunpack.c.l.b16 %v418
          %v474 = vunpack.c.l.b16 %v419
          %v475 = vunpack.c.l.b16 %v420
          %v476 = vunpack.c.l.b16 %v421
          %v477 = vunpack.c.l.b16 %v422
          %v478 = vunpack.c.l.b16 %v423
          %v479 = vunpack.c.l.b16 %v424
          %v480 = vunpack.c.l.b16 %v425
          %v481 = vunpack.c.l.b16 %v426
          %v482 = vunpack.c.l.b16 %v427
          %v483 = vunpack.c.l.b16 %v428
          %v484 = vunpack.c.l.b16 %v429
          %v485 = vunpack.c.l.b16 %v430
          %v486 = vunpack.c.l.b16 %v431
          %v487 = vunpack.c.l.b16 %v432
          %v488 = vpack.c.b16 %v473, %v472
          %v489 = vpack.c.b16 %v475, %v474
          %v490 = vpack.c.b16 %v477, %v476
          %v491 = vpack.c.b16 %v479, %v478
          %v492 = vpack.c.b16 %v481, %v480
          %v493 = vpack.c.b16 %v483, %v482
          %v494 = vpack.c.b16 %v485, %v484
          %v495 = vpack.c.b16 %v487, %v486
          %v520 = vunpack.c.l.b16 %v433
          %v521 = vunpack.c.l.b16 %v434
          %v522 = vunpack.c.l.b16 %v435
          %v523 = vunpack.c.l.b16 %v436
          %v524 = vunpack.c.l.b16 %v437
          %v525 = vunpack.c.l.b16 %v438
          %v526 = vunpack.c.l.b16 %v439
          %v527 = vunpack.c.l.b16 %v440
          %v528 = vunpack.c.l.b16 %v441
          %v529 = vunpack.c.l.b16 %v442
          %v530 = vunpack.c.l.b16 %v443
          %v531 = vunpack.c.l.b16 %v444
          %v532 = vunpack.c.l.b16 %v445
          %v533 = vunpack.c.l.b16 %v446
          %v534 = vunpack.c.l.b16 %v447
          %v535 = vunpack.c.l.b16 %v448
          %v536 = vpack.c.b16 %v521, %v520
          %v537 = vpack.c.b16 %v523, %v522
          %v538 = vpack.c.b16 %v525, %v524
          %v539 = vpack.c.b16 %v527, %v526
          %v540 = vpack.c.b16 %v529, %v528
          %v541 = vpack.c.b16 %v531, %v530
          %v542 = vpack.c.b16 %v533, %v532
          %v543 = vpack.c.b16 %v535, %v534
          %552 = vmatprep.subr.bf16.mxu0 0
          %553 = vmatpush1.bf16.msra.mxu0 %v536
          %554 = vmatprep.subr.bf16.mxu0 0
          %555 = vmatpush1.bf16.msra.mxu0 %v537
          %556 = vmatprep.subr.bf16.mxu0 0
          %557 = vmatpush1.bf16.msra.mxu0 %v538
          %558 = vmatprep.subr.bf16.mxu0 0
          %559 = vmatpush1.bf16.msra.mxu0 %v539
          %560 = vmatprep.subr.bf16.mxu0 0
          %561 = vmatpush1.bf16.msra.mxu0 %v540
          %562 = vmatprep.subr.bf16.mxu0 0
          %563 = vmatpush1.bf16.msra.mxu0 %v541
          %564 = vmatprep.subr.bf16.mxu0 0
          %565 = vmatpush1.bf16.msra.mxu0 %v542
          %566 = vmatprep.subr.bf16.mxu0 0
          %567 = vmatpush1.bf16.msra.mxu0 %v543
          %568 = vmatprep.subr.bf16.mxu0 0
          %569 = vmatpush1.bf16.msra.mxu0 0
          %570 = vmatprep.subr.bf16.mxu0 0
          %571 = vmatpush1.bf16.msra.mxu0 0
          %572 = vmatprep.subr.bf16.mxu0 0
          %573 = vmatpush1.bf16.msra.mxu0 0
          %574 = vmatprep.subr.bf16.mxu0 0
          %575 = vmatpush1.bf16.msra.mxu0 0
          %576 = vmatprep.subr.bf16.mxu0 0
          %577 = vmatpush1.bf16.msra.mxu0 0
          %578 = vmatprep.subr.bf16.mxu0 0
          %579 = vmatpush1.bf16.msra.mxu0 0
          %580 = vmatprep.subr.bf16.mxu0 0
          %581 = vmatpush1.bf16.msra.mxu0 0
          %582 = vmatprep.subr.bf16.mxu0 0
          %583 = vmatpush1.bf16.msra.mxu0 0
          %584 = vmatprep.mubr.bf16.mxu0 0
          %585 = vmatmul.mubr.bf16.gmra.mrb[0].mxu0 %v488
          %v586 = vpop.f32.mrb[0].mxu0
          %v587 = vadd.f32 %v454, %v586
          %v588 = vpop.f32.mrb[0].mxu0
          %v589 = vpop.f32.mrb[0].mxu0
          %v590 = vadd.f32 %v454, %v589
          %v591 = vpop.f32.mrb[0].mxu0
          %592 = vmatprep.mubr.bf16.mxu0 0
          %593 = vmatmul.mubr.bf16.gmra.mrb[0].mxu0 %v489
          %v594 = vpop.f32.mrb[0].mxu0
          %v595 = vadd.f32 %v454, %v594
          %v596 = vpop.f32.mrb[0].mxu0
          %v597 = vpop.f32.mrb[0].mxu0
          %v598 = vadd.f32 %v454, %v597
          %v599 = vpop.f32.mrb[0].mxu0
          %600 = vmatprep.mubr.bf16.mxu0 0
          %601 = vmatmul.mubr.bf16.gmra.mrb[0].mxu0 %v490
          %v602 = vpop.f32.mrb[0].mxu0
          %v603 = vadd.f32 %v454, %v602
          %v604 = vpop.f32.mrb[0].mxu0
          %v605 = vpop.f32.mrb[0].mxu0
          %v606 = vadd.f32 %v454, %v605
          %v607 = vpop.f32.mrb[0].mxu0
          %608 = vmatprep.mubr.bf16.mxu0 0
          %609 = vmatmul.mubr.bf16.gmra.mrb[0].mxu0 %v491
          %v610 = vpop.f32.mrb[0].mxu0
          %v611 = vadd.f32 %v454, %v610
          %v612 = vpop.f32.mrb[0].mxu0
          %v613 = vpop.f32.mrb[0].mxu0
          %v614 = vadd.f32 %v454, %v613
          %v615 = vpop.f32.mrb[0].mxu0
          %616 = vmatprep.mubr.bf16.mxu0 0
          %617 = vmatmul.mubr.bf16.gmra.mrb[0].mxu0 %v492
          %v618 = vpop.f32.mrb[0].mxu0
          %v619 = vadd.f32 %v454, %v618
          %v620 = vpop.f32.mrb[0].mxu0
          %v621 = vpop.f32.mrb[0].mxu0
          %v622 = vadd.f32 %v454, %v621
          %v623 = vpop.f32.mrb[0].mxu0
          %624 = vmatprep.mubr.bf16.mxu0 0
          %625 = vmatmul.mubr.bf16.gmra.mrb[0].mxu0 %v493
          %v626 = vpop.f32.mrb[0].mxu0
          %v627 = vadd.f32 %v454, %v626
          %v628 = vpop.f32.mrb[0].mxu0
          %v629 = vpop.f32.mrb[0].mxu0
          %v630 = vadd.f32 %v454, %v629
          %v631 = vpop.f32.mrb[0].mxu0
          %632 = vmatprep.mubr.bf16.mxu0 0
          %633 = vmatmul.mubr.bf16.gmra.mrb[0].mxu0 %v494
          %v634 = vpop.f32.mrb[0].mxu0
          %v635 = vadd.f32 %v454, %v634
          %v636 = vpop.f32.mrb[0].mxu0
          %v637 = vpop.f32.mrb[0].mxu0
          %v638 = vadd.f32 %v454, %v637
          %v639 = vpop.f32.mrb[0].mxu0
          %640 = vmatprep.mubr.bf16.mxu0 0
          %641 = vmatmul.mubr.bf16.gmra.mrb[0].mxu0 %v495
          %v642 = vpop.f32.mrb[0].mxu0
          %v643 = vadd.f32 %v454, %v642
          %v644 = vpop.f32.mrb[0].mxu0
          %v645 = vpop.f32.mrb[0].mxu0
          %v646 = vadd.f32 %v454, %v645
          %v647 = vpop.f32.mrb[0].mxu0
          %648 = vdwg.mxu0
          %649 = vst [vmem:[#allocation3] sm:$0xff] %v587
          %650 = vst [vmem:[#allocation3 + $0x8] sm:$0xff] %v590
          %651 = vst [vmem:[#allocation3 + $0x10] sm:$0xff] %v595
          %652 = vst [vmem:[#allocation3 + $0x18] sm:$0xff] %v598
          %653 = vst [vmem:[#allocation3 + $0x20] sm:$0xff] %v603
          %654 = vst [vmem:[#allocation3 + $0x28] sm:$0xff] %v606
          %655 = vst [vmem:[#allocation3 + $0x30] sm:$0xff] %v611
          %656 = vst [vmem:[#allocation3 + $0x38] sm:$0xff] %v614
          %657 = vst [vmem:[#allocation3 + $0x40] sm:$0xff] %v619
          %658 = vst [vmem:[#allocation3 + $0x48] sm:$0xff] %v622
          %659 = vst [vmem:[#allocation3 + $0x50] sm:$0xff] %v627
          %660 = vst [vmem:[#allocation3 + $0x58] sm:$0xff] %v630
          %661 = vst [vmem:[#allocation3 + $0x60] sm:$0xff] %v635
          %662 = vst [vmem:[#allocation3 + $0x68] sm:$0xff] %v638
          %663 = vst [vmem:[#allocation3 + $0x70] sm:$0xff] %v643
          %664 = vst [vmem:[#allocation3 + $0x78] sm:$0xff] %v646
        $region68: #{tpu_custom_call.1} parent=43 // pred_fallthru
          _
        %v665 = vld [vmem:[#allocation2] sm:$0xff]
        %v666 = vld [vmem:[#allocation2 + $0x8] sm:$0xff]
        %v667 = vld [vmem:[#allocation2 + $0x10] sm:$0xff]
        %v668 = vld [vmem:[#allocation2 + $0x18] sm:$0xff]
        %v669 = vld [vmem:[#allocation2 + $0x20] sm:$0xff]
        %v670 = vld [vmem:[#allocation2 + $0x28] sm:$0xff]
        %v671 = vld [vmem:[#allocation2 + $0x30] sm:$0xff]
        %v672 = vld [vmem:[#allocation2 + $0x38] sm:$0xff]
        %v673 = vld [vmem:[#allocation2 + $0x40] sm:$0xff]
        %v674 = vld [vmem:[#allocation2 + $0x48] sm:$0xff]
        %v675 = vld [vmem:[#allocation2 + $0x50] sm:$0xff]
        %v676 = vld [vmem:[#allocation2 + $0x58] sm:$0xff]
        %v677 = vld [vmem:[#allocation2 + $0x60] sm:$0xff]
        %v678 = vld [vmem:[#allocation2 + $0x68] sm:$0xff]
        %v679 = vld [vmem:[#allocation2 + $0x70] sm:$0xff]
        %v680 = vld [vmem:[#allocation2 + $0x78] sm:$0xff]
        %v681 = vld [vmem:[%s327] sm:$0xf]
        %v682 = vld [vmem:[%s327 + $0x4] sm:$0xf]
        %v683 = vld [vmem:[%s327 + $0x8] sm:$0xf]
        %v684 = vld [vmem:[%s327 + $0xc] sm:$0xf]
        %v685 = vld [vmem:[%s327 + $0x10] sm:$0xf]
        %v686 = vld [vmem:[%s327 + $0x14] sm:$0xf]
        %v687 = vld [vmem:[%s327 + $0x18] sm:$0xf]
        %v688 = vld [vmem:[%s327 + $0x1c] sm:$0xf]
        %v689 = vld [vmem:[%s327 + $0x20] sm:$0xf]
        %v690 = vld [vmem:[%s327 + $0x24] sm:$0xf]
        %v691 = vld [vmem:[%s327 + $0x28] sm:$0xf]
        %v692 = vld [vmem:[%s327 + $0x2c] sm:$0xf]
        %v693 = vld [vmem:[%s327 + $0x30] sm:$0xf]
        %v694 = vld [vmem:[%s327 + $0x34] sm:$0xf]
        %v695 = vld [vmem:[%s327 + $0x38] sm:$0xf]
        %v696 = vld [vmem:[%s327 + $0x3c] sm:$0xf]
        %v697 = vld [vmem:[%s336] sm:$0xf]
        %v698 = vld [vmem:[%s336 + $0x4] sm:$0xf]
        %v699 = vld [vmem:[%s336 + $0x8] sm:$0xf]
        %v700 = vld [vmem:[%s336 + $0xc] sm:$0xf]
        %v701 = vld [vmem:[%s336 + $0x10] sm:$0xf]
        %v702 = vld [vmem:[%s336 + $0x14] sm:$0xf]
        %v703 = vld [vmem:[%s336 + $0x18] sm:$0xf]
        %v704 = vld [vmem:[%s336 + $0x1c] sm:$0xf]
        %v705 = vld [vmem:[%s336 + $0x20] sm:$0xf]
        %v706 = vld [vmem:[%s336 + $0x24] sm:$0xf]
        %v707 = vld [vmem:[%s336 + $0x28] sm:$0xf]
        %v708 = vld [vmem:[%s336 + $0x2c] sm:$0xf]
        %v709 = vld [vmem:[%s336 + $0x30] sm:$0xf]
        %v710 = vld [vmem:[%s336 + $0x34] sm:$0xf]
        %v711 = vld [vmem:[%s336 + $0x38] sm:$0xf]
        %v712 = vld [vmem:[%s336 + $0x3c] sm:$0xf]
        %v729 = vunpack.c.l.b16 %v681
        %v730 = vunpack.c.l.b16 %v682
        %v731 = vunpack.c.l.b16 %v683
        %v732 = vunpack.c.l.b16 %v684
        %v733 = vunpack.c.l.b16 %v685
        %v734 = vunpack.c.l.b16 %v686
        %v735 = vunpack.c.l.b16 %v687
        %v736 = vunpack.c.l.b16 %v688
        %v737 = vunpack.c.l.b16 %v689
        %v738 = vunpack.c.l.b16 %v690
        %v739 = vunpack.c.l.b16 %v691
        %v740 = vunpack.c.l.b16 %v692
        %v741 = vunpack.c.l.b16 %v693
        %v742 = vunpack.c.l.b16 %v694
        %v743 = vunpack.c.l.b16 %v695
        %v744 = vunpack.c.l.b16 %v696
        %v745 = vpack.c.b16 %v730, %v729
        %v746 = vpack.c.b16 %v732, %v731
        %v747 = vpack.c.b16 %v734, %v733
        %v748 = vpack.c.b16 %v736, %v735
        %v749 = vpack.c.b16 %v738, %v737
        %v750 = vpack.c.b16 %v740, %v739
        %v751 = vpack.c.b16 %v742, %v741
        %v752 = vpack.c.b16 %v744, %v743
        %v777 = vunpack.c.l.b16 %v697
        %v778 = vunpack.c.l.b16 %v698
        %v779 = vunpack.c.l.b16 %v699
        %v780 = vunpack.c.l.b16 %v700
        %v781 = vunpack.c.l.b16 %v701
        %v782 = vunpack.c.l.b16 %v702
        %v783 = vunpack.c.l.b16 %v703
        %v784 = vunpack.c.l.b16 %v704
        %v785 = vunpack.c.l.b16 %v705
        %v786 = vunpack.c.l.b16 %v706
        %v787 = vunpack.c.l.b16 %v707
        %v788 = vunpack.c.l.b16 %v708
        %v789 = vunpack.c.l.b16 %v709
        %v790 = vunpack.c.l.b16 %v710
        %v791 = vunpack.c.l.b16 %v711
        %v792 = vunpack.c.l.b16 %v712
        %v793 = vpack.c.b16 %v778, %v777
        %v794 = vpack.c.b16 %v780, %v779
        %v795 = vpack.c.b16 %v782, %v781
        %v796 = vpack.c.b16 %v784, %v783
        %v797 = vpack.c.b16 %v786, %v785
        %v798 = vpack.c.b16 %v788, %v787
        %v799 = vpack.c.b16 %v790, %v789
        %v800 = vpack.c.b16 %v792, %v791
        %809 = vmatprep.subr.bf16.mxu0 0
        %810 = vmatpush1.bf16.msra.mxu0 %v793
        %811 = vmatprep.subr.bf16.mxu0 0
        %812 = vmatpush1.bf16.msra.mxu0 %v794
        %813 = vmatprep.subr.bf16.mxu0 0
        %814 = vmatpush1.bf16.msra.mxu0 %v795
        %815 = vmatprep.subr.bf16.mxu0 0
        %816 = vmatpush1.bf16.msra.mxu0 %v796
        %817 = vmatprep.subr.bf16.mxu0 0
        %818 = vmatpush1.bf16.msra.mxu0 %v797
        %819 = vmatprep.subr.bf16.mxu0 0
        %820 = vmatpush1.bf16.msra.mxu0 %v798
        %821 = vmatprep.subr.bf16.mxu0 0
        %822 = vmatpush1.bf16.msra.mxu0 %v799
        %823 = vmatprep.subr.bf16.mxu0 0
        %824 = vmatpush1.bf16.msra.mxu0 %v800
        %825 = vmatprep.subr.bf16.mxu0 0
        %826 = vmatpush1.bf16.msra.mxu0 0
        %827 = vmatprep.subr.bf16.mxu0 0
        %828 = vmatpush1.bf16.msra.mxu0 0
        %829 = vmatprep.subr.bf16.mxu0 0
        %830 = vmatpush1.bf16.msra.mxu0 0
        %831 = vmatprep.subr.bf16.mxu0 0
        %832 = vmatpush1.bf16.msra.mxu0 0
        %833 = vmatprep.subr.bf16.mxu0 0
        %834 = vmatpush1.bf16.msra.mxu0 0
        %835 = vmatprep.subr.bf16.mxu0 0
        %836 = vmatpush1.bf16.msra.mxu0 0
        %837 = vmatprep.subr.bf16.mxu0 0
        %838 = vmatpush1.bf16.msra.mxu0 0
        %839 = vmatprep.subr.bf16.mxu0 0
        %840 = vmatpush1.bf16.msra.mxu0 0
        %841 = vmatprep.mubr.bf16.mxu0 0
        %842 = vmatmul.mubr.bf16.gmra.mrb[0].mxu0 %v745
        %v843 = vpop.f32.mrb[0].mxu0
        %v844 = vadd.f32 0.0, %v843
        %v845 = vpop.f32.mrb[0].mxu0
        %v846 = vpop.f32.mrb[0].mxu0
        %v847 = vadd.f32 0.0, %v846
        %v848 = vpop.f32.mrb[0].mxu0
        %849 = vmatprep.mubr.bf16.mxu0 0
        %850 = vmatmul.mubr.bf16.gmra.mrb[0].mxu0 %v746
        %v851 = vpop.f32.mrb[0].mxu0
        %v852 = vadd.f32 0.0, %v851
        %v853 = vpop.f32.mrb[0].mxu0
        %v854 = vpop.f32.mrb[0].mxu0
        %v855 = vadd.f32 0.0, %v854
        %v856 = vpop.f32.mrb[0].mxu0
        %857 = vmatprep.mubr.bf16.mxu0 0
        %858 = vmatmul.mubr.bf16.gmra.mrb[0].mxu0 %v747
        %v859 = vpop.f32.mrb[0].mxu0
        %v860 = vadd.f32 0.0, %v859
        %v861 = vpop.f32.mrb[0].mxu0
        %v862 = vpop.f32.mrb[0].mxu0
        %v863 = vadd.f32 0.0, %v862
        %v864 = vpop.f32.mrb[0].mxu0
        %865 = vmatprep.mubr.bf16.mxu0 0
        %866 = vmatmul.mubr.bf16.gmra.mrb[0].mxu0 %v748
        %v867 = vpop.f32.mrb[0].mxu0
        %v868 = vadd.f32 0.0, %v867
        %v869 = vpop.f32.mrb[0].mxu0
        %v870 = vpop.f32.mrb[0].mxu0
        %v871 = vadd.f32 0.0, %v870
        %v872 = vpop.f32.mrb[0].mxu0
        %873 = vmatprep.mubr.bf16.mxu0 0
        %874 = vmatmul.mubr.bf16.gmra.mrb[0].mxu0 %v749
        %v875 = vpop.f32.mrb[0].mxu0
        %v876 = vadd.f32 0.0, %v875
        %v877 = vpop.f32.mrb[0].mxu0
        %v878 = vpop.f32.mrb[0].mxu0
        %v879 = vadd.f32 0.0, %v878
        %v880 = vpop.f32.mrb[0].mxu0
        %881 = vmatprep.mubr.bf16.mxu0 0
        %882 = vmatmul.mubr.bf16.gmra.mrb[0].mxu0 %v750
        %v883 = vpop.f32.mrb[0].mxu0
        %v884 = vadd.f32 0.0, %v883
        %v885 = vpop.f32.mrb[0].mxu0
        %v886 = vpop.f32.mrb[0].mxu0
        %v887 = vadd.f32 0.0, %v886
        %v888 = vpop.f32.mrb[0].mxu0
        %889 = vmatprep.mubr.bf16.mxu0 0
        %890 = vmatmul.mubr.bf16.gmra.mrb[0].mxu0 %v751
        %v891 = vpop.f32.mrb[0].mxu0
        %v892 = vadd.f32 0.0, %v891
        %v893 = vpop.f32.mrb[0].mxu0
        %v894 = vpop.f32.mrb[0].mxu0
        %v895 = vadd.f32 0.0, %v894
        %v896 = vpop.f32.mrb[0].mxu0
        %897 = vmatprep.mubr.bf16.mxu0 0
        %898 = vmatmul.mubr.bf16.gmra.mrb[0].mxu0 %v752
        %v899 = vpop.f32.mrb[0].mxu0
        %v900 = vadd.f32 0.0, %v899
        %v901 = vpop.f32.mrb[0].mxu0
        %v902 = vpop.f32.mrb[0].mxu0
        %v903 = vadd.f32 0.0, %v902
        %v904 = vpop.f32.mrb[0].mxu0
        %905 = vdwg.mxu0
        %v906 = vadd.f32 %v665, %v844
        %v907 = vadd.f32 %v666, %v847
        %v908 = vadd.f32 %v667, %v852
        %v909 = vadd.f32 %v668, %v855
        %v910 = vadd.f32 %v669, %v860
        %v911 = vadd.f32 %v670, %v863
        %v912 = vadd.f32 %v671, %v868
        %v913 = vadd.f32 %v672, %v871
        %v914 = vadd.f32 %v673, %v876
        %v915 = vadd.f32 %v674, %v879
        %v916 = vadd.f32 %v675, %v884
        %v917 = vadd.f32 %v676, %v887
        %v918 = vadd.f32 %v677, %v892
        %v919 = vadd.f32 %v678, %v895
        %v920 = vadd.f32 %v679, %v900
        %v921 = vadd.f32 %v680, %v903
        %922 = vst [vmem:[#allocation2] sm:$0xff] %v906
        %923 = vst [vmem:[#allocation2 + $0x8] sm:$0xff] %v907
        %924 = vst [vmem:[#allocation2 + $0x10] sm:$0xff] %v908
        %925 = vst [vmem:[#allocation2 + $0x18] sm:$0xff] %v909
        %926 = vst [vmem:[#allocation2 + $0x20] sm:$0xff] %v910
        %927 = vst [vmem:[#allocation2 + $0x28] sm:$0xff] %v911
        %928 = vst [vmem:[#allocation2 + $0x30] sm:$0xff] %v912
        %929 = vst [vmem:[#allocation2 + $0x38] sm:$0xff] %v913
        %930 = vst [vmem:[#allocation2 + $0x40] sm:$0xff] %v914
        %931 = vst [vmem:[#allocation2 + $0x48] sm:$0xff] %v915
        %932 = vst [vmem:[#allocation2 + $0x50] sm:$0xff] %v916
        %933 = vst [vmem:[#allocation2 + $0x58] sm:$0xff] %v917
        %934 = vst [vmem:[#allocation2 + $0x60] sm:$0xff] %v918
        %935 = vst [vmem:[#allocation2 + $0x68] sm:$0xff] %v919
        %936 = vst [vmem:[#allocation2 + $0x70] sm:$0xff] %v920
        %937 = vst [vmem:[#allocation2 + $0x78] sm:$0xff] %v921
        %p938 = scmp.eq.s32.totalorder %s32, 2
        // Predicated region
        $region69: #{tpu_custom_call.1} parent=43 // pred_check
          %p939 = pneg %p938
        $region70: #{tpu_custom_call.1} parent=43 // pred_check_branch
          %941 = sbr.rel (%p939) target = $region72
        $region71: #{tpu_custom_call.1} parent=43 // pred_region
          %v942 = vld [vmem:[#allocation2] sm:$0xff]
          %v943 = vld [vmem:[#allocation2 + $0x8] sm:$0xff]
          %v944 = vld [vmem:[#allocation2 + $0x10] sm:$0xff]
          %v945 = vld [vmem:[#allocation2 + $0x18] sm:$0xff]
          %v946 = vld [vmem:[#allocation2 + $0x20] sm:$0xff]
          %v947 = vld [vmem:[#allocation2 + $0x28] sm:$0xff]
          %v948 = vld [vmem:[#allocation2 + $0x30] sm:$0xff]
          %v949 = vld [vmem:[#allocation2 + $0x38] sm:$0xff]
          %v950 = vld [vmem:[#allocation2 + $0x40] sm:$0xff]
          %v951 = vld [vmem:[#allocation2 + $0x48] sm:$0xff]
          %v952 = vld [vmem:[#allocation2 + $0x50] sm:$0xff]
          %v953 = vld [vmem:[#allocation2 + $0x58] sm:$0xff]
          %v954 = vld [vmem:[#allocation2 + $0x60] sm:$0xff]
          %v955 = vld [vmem:[#allocation2 + $0x68] sm:$0xff]
          %v956 = vld [vmem:[#allocation2 + $0x70] sm:$0xff]
          %v957 = vld [vmem:[#allocation2 + $0x78] sm:$0xff]
          %vm958 = vcmp.gt.f32.partialorder %v942, 0.0
          %vm959 = vcmp.gt.f32.partialorder %v943, 0.0
          %vm960 = vcmp.gt.f32.partialorder %v944, 0.0
          %vm961 = vcmp.gt.f32.partialorder %v945, 0.0
          %vm962 = vcmp.gt.f32.partialorder %v946, 0.0
          %vm963 = vcmp.gt.f32.partialorder %v947, 0.0
          %vm964 = vcmp.gt.f32.partialorder %v948, 0.0
          %vm965 = vcmp.gt.f32.partialorder %v949, 0.0
          %vm966 = vcmp.gt.f32.partialorder %v950, 0.0
          %vm967 = vcmp.gt.f32.partialorder %v951, 0.0
          %vm968 = vcmp.gt.f32.partialorder %v952, 0.0
          %vm969 = vcmp.gt.f32.partialorder %v953, 0.0
          %vm970 = vcmp.gt.f32.partialorder %v954, 0.0
          %vm971 = vcmp.gt.f32.partialorder %v955, 0.0
          %vm972 = vcmp.gt.f32.partialorder %v956, 0.0
          %vm973 = vcmp.gt.f32.partialorder %v957, 0.0
          %v974 = vmax.f32 %v942, 1.0
          %v975 = vmax.f32 %v943, 1.0
          %v976 = vmax.f32 %v944, 1.0
          %v977 = vmax.f32 %v945, 1.0
          %v978 = vmax.f32 %v946, 1.0
          %v979 = vmax.f32 %v947, 1.0
          %v980 = vmax.f32 %v948, 1.0
          %v981 = vmax.f32 %v949, 1.0
          %v982 = vmax.f32 %v950, 1.0
          %v983 = vmax.f32 %v951, 1.0
          %v984 = vmax.f32 %v952, 1.0
          %v985 = vmax.f32 %v953, 1.0
          %v986 = vmax.f32 %v954, 1.0
          %v987 = vmax.f32 %v955, 1.0
          %v988 = vmax.f32 %v956, 1.0
          %v989 = vmax.f32 %v957, 1.0
          %v990 = vrcp.pop %v974
          %v991 = vmul.f32 1.0, %v990
          %v992 = vrcp.pop %v975
          %v993 = vmul.f32 1.0, %v992
          %v994 = vrcp.pop %v976
          %v995 = vmul.f32 1.0, %v994
          %v996 = vrcp.pop %v977
          %v997 = vmul.f32 1.0, %v996
          %v998 = vrcp.pop %v978
          %v999 = vmul.f32 1.0, %v998
          %v1000 = vrcp.pop %v979
          %v1001 = vmul.f32 1.0, %v1000
          %v1002 = vrcp.pop %v980
          %v1003 = vmul.f32 1.0, %v1002
          %v1004 = vrcp.pop %v981
          %v1005 = vmul.f32 1.0, %v1004
          %v1006 = vrcp.pop %v982
          %v1007 = vmul.f32 1.0, %v1006
          %v1008 = vrcp.pop %v983
          %v1009 = vmul.f32 1.0, %v1008
          %v1010 = vrcp.pop %v984
          %v1011 = vmul.f32 1.0, %v1010
          %v1012 = vrcp.pop %v985
          %v1013 = vmul.f32 1.0, %v1012
          %v1014 = vrcp.pop %v986
          %v1015 = vmul.f32 1.0, %v1014
          %v1016 = vrcp.pop %v987
          %v1017 = vmul.f32 1.0, %v1016
          %v1018 = vrcp.pop %v988
          %v1019 = vmul.f32 1.0, %v1018
          %v1020 = vrcp.pop %v989
          %v1021 = vmul.f32 1.0, %v1020
          %v1022 = vsel %vm958, %v991, 0.0
          %v1023 = vsel %vm959, %v993, 0.0
          %v1024 = vsel %vm960, %v995, 0.0
          %v1025 = vsel %vm961, %v997, 0.0
          %v1026 = vsel %vm962, %v999, 0.0
          %v1027 = vsel %vm963, %v1001, 0.0
          %v1028 = vsel %vm964, %v1003, 0.0
          %v1029 = vsel %vm965, %v1005, 0.0
          %v1030 = vsel %vm966, %v1007, 0.0
          %v1031 = vsel %vm967, %v1009, 0.0
          %v1032 = vsel %vm968, %v1011, 0.0
          %v1033 = vsel %vm969, %v1013, 0.0
          %v1034 = vsel %vm970, %v1015, 0.0
          %v1035 = vsel %vm971, %v1017, 0.0
          %v1036 = vsel %vm972, %v1019, 0.0
          %v1037 = vsel %vm973, %v1021, 0.0
          %1039 = vset.pattern.permute.xlu0 16
          %1040 = vperm.xlu0 %1039, %v1022
          %v1041 = vpop.permute.xlu0 %1040
          %1044 = vset.pattern.permute.xlu0 16
          %1045 = vperm.xlu0 %1044, %v1023
          %v1046 = vpop.permute.xlu0 %1045
          %1049 = vset.pattern.permute.xlu0 16
          %1050 = vperm.xlu0 %1049, %v1024
          %v1051 = vpop.permute.xlu0 %1050
          %1054 = vset.pattern.permute.xlu0 16
          %1055 = vperm.xlu0 %1054, %v1025
          %v1056 = vpop.permute.xlu0 %1055
          %1059 = vset.pattern.permute.xlu0 16
          %1060 = vperm.xlu0 %1059, %v1026
          %v1061 = vpop.permute.xlu0 %1060
          %1064 = vset.pattern.permute.xlu0 16
          %1065 = vperm.xlu0 %1064, %v1027
          %v1066 = vpop.permute.xlu0 %1065
          %1069 = vset.pattern.permute.xlu0 16
          %1070 = vperm.xlu0 %1069, %v1028
          %v1071 = vpop.permute.xlu0 %1070
          %1074 = vset.pattern.permute.xlu0 16
          %1075 = vperm.xlu0 %1074, %v1029
          %v1076 = vpop.permute.xlu0 %1075
          %1079 = vset.pattern.permute.xlu0 16
          %1080 = vperm.xlu0 %1079, %v1030
          %v1081 = vpop.permute.xlu0 %1080
          %1084 = vset.pattern.permute.xlu0 16
          %1085 = vperm.xlu0 %1084, %v1031
          %v1086 = vpop.permute.xlu0 %1085
          %1089 = vset.pattern.permute.xlu0 16
          %1090 = vperm.xlu0 %1089, %v1032
          %v1091 = vpop.permute.xlu0 %1090
          %1094 = vset.pattern.permute.xlu0 16
          %1095 = vperm.xlu0 %1094, %v1033
          %v1096 = vpop.permute.xlu0 %1095
          %1099 = vset.pattern.permute.xlu0 16
          %1100 = vperm.xlu0 %1099, %v1034
          %v1101 = vpop.permute.xlu0 %1100
          %1104 = vset.pattern.permute.xlu0 16
          %1105 = vperm.xlu0 %1104, %v1035
          %v1106 = vpop.permute.xlu0 %1105
          %1109 = vset.pattern.permute.xlu0 16
          %1110 = vperm.xlu0 %1109, %v1036
          %v1111 = vpop.permute.xlu0 %1110
          %1114 = vset.pattern.permute.xlu0 16
          %1115 = vperm.xlu0 %1114, %v1037
          %v1116 = vpop.permute.xlu0 %1115
          %v1118 = vmul.f32 %v942, %v1041
          %v1119 = vmul.f32 %v943, %v1046
          %v1120 = vmul.f32 %v944, %v1051
          %v1121 = vmul.f32 %v945, %v1056
          %v1122 = vmul.f32 %v946, %v1061
          %v1123 = vmul.f32 %v947, %v1066
          %v1124 = vmul.f32 %v948, %v1071
          %v1125 = vmul.f32 %v949, %v1076
          %v1126 = vmul.f32 %v950, %v1081
          %v1127 = vmul.f32 %v951, %v1086
          %v1128 = vmul.f32 %v952, %v1091
          %v1129 = vmul.f32 %v953, %v1096
          %v1130 = vmul.f32 %v954, %v1101
          %v1131 = vmul.f32 %v955, %v1106
          %v1132 = vmul.f32 %v956, %v1111
          %v1133 = vmul.f32 %v957, %v1116
          %v1134 = vld [vmem:[#allocation3] sm:$0xff]
          %v1135 = vld [vmem:[#allocation3 + $0x8] sm:$0xff]
          %v1136 = vld [vmem:[#allocation3 + $0x10] sm:$0xff]
          %v1137 = vld [vmem:[#allocation3 + $0x18] sm:$0xff]
          %v1138 = vld [vmem:[#allocation3 + $0x20] sm:$0xff]
          %v1139 = vld [vmem:[#allocation3 + $0x28] sm:$0xff]
          %v1140 = vld [vmem:[#allocation3 + $0x30] sm:$0xff]
          %v1141 = vld [vmem:[#allocation3 + $0x38] sm:$0xff]
          %v1142 = vld [vmem:[#allocation3 + $0x40] sm:$0xff]
          %v1143 = vld [vmem:[#allocation3 + $0x48] sm:$0xff]
          %v1144 = vld [vmem:[#allocation3 + $0x50] sm:$0xff]
          %v1145 = vld [vmem:[#allocation3 + $0x58] sm:$0xff]
          %v1146 = vld [vmem:[#allocation3 + $0x60] sm:$0xff]
          %v1147 = vld [vmem:[#allocation3 + $0x68] sm:$0xff]
          %v1148 = vld [vmem:[#allocation3 + $0x70] sm:$0xff]
          %v1149 = vld [vmem:[#allocation3 + $0x78] sm:$0xff]
          %v1150 = vpack.c.bf16 %v1119, %v1118
          %v1151 = vpack.c.bf16 %v1121, %v1120
          %v1152 = vpack.c.bf16 %v1123, %v1122
          %v1153 = vpack.c.bf16 %v1125, %v1124
          %v1154 = vpack.c.bf16 %v1127, %v1126
          %v1155 = vpack.c.bf16 %v1129, %v1128
          %v1156 = vpack.c.bf16 %v1131, %v1130
          %v1157 = vpack.c.bf16 %v1133, %v1132
          %v1158 = vld [vmem:[#allocation12] sm:$0xf]
          %v1159 = vld [vmem:[#allocation12 + $0x4] sm:$0xf]
          %v1160 = vld [vmem:[#allocation12 + $0x8] sm:$0xf]
          %v1161 = vld [vmem:[#allocation12 + $0xc] sm:$0xf]
          %v1162 = vld [vmem:[#allocation12 + $0x10] sm:$0xf]
          %v1163 = vld [vmem:[#allocation12 + $0x14] sm:$0xf]
          %v1164 = vld [vmem:[#allocation12 + $0x18] sm:$0xf]
          %v1165 = vld [vmem:[#allocation12 + $0x1c] sm:$0xf]
          %v1166 = vld [vmem:[#allocation12 + $0x20] sm:$0xf]
          %v1167 = vld [vmem:[#allocation12 + $0x24] sm:$0xf]
          %v1168 = vld [vmem:[#allocation12 + $0x28] sm:$0xf]
          %v1169 = vld [vmem:[#allocation12 + $0x2c] sm:$0xf]
          %v1170 = vld [vmem:[#allocation12 + $0x30] sm:$0xf]
          %v1171 = vld [vmem:[#allocation12 + $0x34] sm:$0xf]
          %v1172 = vld [vmem:[#allocation12 + $0x38] sm:$0xf]
          %v1173 = vld [vmem:[#allocation12 + $0x3c] sm:$0xf]
          %v1190 = vunpack.c.l.b16 %v1158
          %v1191 = vunpack.c.l.b16 %v1159
          %v1192 = vunpack.c.l.b16 %v1160
          %v1193 = vunpack.c.l.b16 %v1161
          %v1194 = vunpack.c.l.b16 %v1162
          %v1195 = vunpack.c.l.b16 %v1163
          %v1196 = vunpack.c.l.b16 %v1164
          %v1197 = vunpack.c.l.b16 %v1165
          %v1198 = vunpack.c.l.b16 %v1166
          %v1199 = vunpack.c.l.b16 %v1167
          %v1200 = vunpack.c.l.b16 %v1168
          %v1201 = vunpack.c.l.b16 %v1169
          %v1202 = vunpack.c.l.b16 %v1170
          %v1203 = vunpack.c.l.b16 %v1171
          %v1204 = vunpack.c.l.b16 %v1172
          %v1205 = vunpack.c.l.b16 %v1173
          %v1206 = vpack.c.b16 %v1191, %v1190
          %v1207 = vpack.c.b16 %v1193, %v1192
          %v1208 = vpack.c.b16 %v1195, %v1194
          %v1209 = vpack.c.b16 %v1197, %v1196
          %v1210 = vpack.c.b16 %v1199, %v1198
          %v1211 = vpack.c.b16 %v1201, %v1200
          %v1212 = vpack.c.b16 %v1203, %v1202
          %v1213 = vpack.c.b16 %v1205, %v1204
          %1222 = vmatprep.subr.bf16.mxu0 0
          %1223 = vmatpush1.bf16.msra.mxu0 %v1206
          %1224 = vmatprep.subr.bf16.mxu0 0
          %1225 = vmatpush1.bf16.msra.mxu0 %v1207
          %1226 = vmatprep.subr.bf16.mxu0 0
          %1227 = vmatpush1.bf16.msra.mxu0 %v1208
          %1228 = vmatprep.subr.bf16.mxu0 0
          %1229 = vmatpush1.bf16.msra.mxu0 %v1209
          %1230 = vmatprep.subr.bf16.mxu0 0
          %1231 = vmatpush1.bf16.msra.mxu0 %v1210
          %1232 = vmatprep.subr.bf16.mxu0 0
          %1233 = vmatpush1.bf16.msra.mxu0 %v1211
          %1234 = vmatprep.subr.bf16.mxu0 0
          %1235 = vmatpush1.bf16.msra.mxu0 %v1212
          %1236 = vmatprep.subr.bf16.mxu0 0
          %1237 = vmatpush1.bf16.msra.mxu0 %v1213
          %1238 = vmatprep.subr.bf16.mxu0 0
          %1239 = vmatpush1.bf16.msra.mxu0 0
          %1240 = vmatprep.subr.bf16.mxu0 0
          %1241 = vmatpush1.bf16.msra.mxu0 0
          %1242 = vmatprep.subr.bf16.mxu0 0
          %1243 = vmatpush1.bf16.msra.mxu0 0
          %1244 = vmatprep.subr.bf16.mxu0 0
          %1245 = vmatpush1.bf16.msra.mxu0 0
          %1246 = vmatprep.subr.bf16.mxu0 0
          %1247 = vmatpush1.bf16.msra.mxu0 0
          %1248 = vmatprep.subr.bf16.mxu0 0
          %1249 = vmatpush1.bf16.msra.mxu0 0
          %1250 = vmatprep.subr.bf16.mxu0 0
          %1251 = vmatpush1.bf16.msra.mxu0 0
          %1252 = vmatprep.subr.bf16.mxu0 0
          %1253 = vmatpush1.bf16.msra.mxu0 0
          %1254 = vmatprep.mubr.bf16.mxu0 0
          %1255 = vmatmul.mubr.bf16.gmra.mrb[0].mxu0 %v1150
          %v1256 = vpop.f32.mrb[0].mxu0
          %v1257 = vadd.f32 0.0, %v1256
          %v1258 = vpop.f32.mrb[0].mxu0
          %v1259 = vpop.f32.mrb[0].mxu0
          %v1260 = vadd.f32 0.0, %v1259
          %v1261 = vpop.f32.mrb[0].mxu0
          %1262 = vmatprep.mubr.bf16.mxu0 0
          %1263 = vmatmul.mubr.bf16.gmra.mrb[0].mxu0 %v1151
          %v1264 = vpop.f32.mrb[0].mxu0
          %v1265 = vadd.f32 0.0, %v1264
          %v1266 = vpop.f32.mrb[0].mxu0
          %v1267 = vpop.f32.mrb[0].mxu0
          %v1268 = vadd.f32 0.0, %v1267
          %v1269 = vpop.f32.mrb[0].mxu0
          %1270 = vmatprep.mubr.bf16.mxu0 0
          %1271 = vmatmul.mubr.bf16.gmra.mrb[0].mxu0 %v1152
          %v1272 = vpop.f32.mrb[0].mxu0
          %v1273 = vadd.f32 0.0, %v1272
          %v1274 = vpop.f32.mrb[0].mxu0
          %v1275 = vpop.f32.mrb[0].mxu0
          %v1276 = vadd.f32 0.0, %v1275
          %v1277 = vpop.f32.mrb[0].mxu0
          %1278 = vmatprep.mubr.bf16.mxu0 0
          %1279 = vmatmul.mubr.bf16.gmra.mrb[0].mxu0 %v1153
          %v1280 = vpop.f32.mrb[0].mxu0
          %v1281 = vadd.f32 0.0, %v1280
          %v1282 = vpop.f32.mrb[0].mxu0
          %v1283 = vpop.f32.mrb[0].mxu0
          %v1284 = vadd.f32 0.0, %v1283
          %v1285 = vpop.f32.mrb[0].mxu0
          %1286 = vmatprep.mubr.bf16.mxu0 0
          %1287 = vmatmul.mubr.bf16.gmra.mrb[0].mxu0 %v1154
          %v1288 = vpop.f32.mrb[0].mxu0
          %v1289 = vadd.f32 0.0, %v1288
          %v1290 = vpop.f32.mrb[0].mxu0
          %v1291 = vpop.f32.mrb[0].mxu0
          %v1292 = vadd.f32 0.0, %v1291
          %v1293 = vpop.f32.mrb[0].mxu0
          %1294 = vmatprep.mubr.bf16.mxu0 0
          %1295 = vmatmul.mubr.bf16.gmra.mrb[0].mxu0 %v1155
          %v1296 = vpop.f32.mrb[0].mxu0
          %v1297 = vadd.f32 0.0, %v1296
          %v1298 = vpop.f32.mrb[0].mxu0
          %v1299 = vpop.f32.mrb[0].mxu0
          %v1300 = vadd.f32 0.0, %v1299
          %v1301 = vpop.f32.mrb[0].mxu0
          %1302 = vmatprep.mubr.bf16.mxu0 0
          %1303 = vmatmul.mubr.bf16.gmra.mrb[0].mxu0 %v1156
          %v1304 = vpop.f32.mrb[0].mxu0
          %v1305 = vadd.f32 0.0, %v1304
          %v1306 = vpop.f32.mrb[0].mxu0
          %v1307 = vpop.f32.mrb[0].mxu0
          %v1308 = vadd.f32 0.0, %v1307
          %v1309 = vpop.f32.mrb[0].mxu0
          %1310 = vmatprep.mubr.bf16.mxu0 0
          %1311 = vmatmul.mubr.bf16.gmra.mrb[0].mxu0 %v1157
          %v1312 = vpop.f32.mrb[0].mxu0
          %v1313 = vadd.f32 0.0, %v1312
          %v1314 = vpop.f32.mrb[0].mxu0
          %v1315 = vpop.f32.mrb[0].mxu0
          %v1316 = vadd.f32 0.0, %v1315
          %v1317 = vpop.f32.mrb[0].mxu0
          %1318 = vdwg.mxu0
          %v1319 = vadd.f32 %v1134, %v1257
          %v1320 = vadd.f32 %v1135, %v1260
          %v1321 = vadd.f32 %v1136, %v1265
          %v1322 = vadd.f32 %v1137, %v1268
          %v1323 = vadd.f32 %v1138, %v1273
          %v1324 = vadd.f32 %v1139, %v1276
          %v1325 = vadd.f32 %v1140, %v1281
          %v1326 = vadd.f32 %v1141, %v1284
          %v1327 = vadd.f32 %v1142, %v1289
          %v1328 = vadd.f32 %v1143, %v1292
          %v1329 = vadd.f32 %v1144, %v1297
          %v1330 = vadd.f32 %v1145, %v1300
          %v1331 = vadd.f32 %v1146, %v1305
          %v1332 = vadd.f32 %v1147, %v1308
          %v1333 = vadd.f32 %v1148, %v1313
          %v1334 = vadd.f32 %v1149, %v1316
          %v1335 = vmax.f32 %v1319, 0.0
          %v1336 = vmax.f32 %v1320, 0.0
          %v1337 = vmax.f32 %v1321, 0.0
          %v1338 = vmax.f32 %v1322, 0.0
          %v1339 = vmax.f32 %v1323, 0.0
          %v1340 = vmax.f32 %v1324, 0.0
          %v1341 = vmax.f32 %v1325, 0.0
          %v1342 = vmax.f32 %v1326, 0.0
          %v1343 = vmax.f32 %v1327, 0.0
          %v1344 = vmax.f32 %v1328, 0.0
          %v1345 = vmax.f32 %v1329, 0.0
          %v1346 = vmax.f32 %v1330, 0.0
          %v1347 = vmax.f32 %v1331, 0.0
          %v1348 = vmax.f32 %v1332, 0.0
          %v1349 = vmax.f32 %v1333, 0.0
          %v1350 = vmax.f32 %v1334, 0.0
          %v1351 = vlaneseq
          %v1352 = vand.u32 %v1351, 127
          %vm1353 = vcmp.eq.s32.totalorder %v1352, 32
          %v1354 = vsel %vm1353, 1.0, %v1335
          %v1355 = vsel %vm1353, 1.0, %v1336
          %v1356 = vsel %vm1353, 1.0, %v1337
          %v1357 = vsel %vm1353, 1.0, %v1338
          %v1358 = vsel %vm1353, 1.0, %v1339
          %v1359 = vsel %vm1353, 1.0, %v1340
          %v1360 = vsel %vm1353, 1.0, %v1341
          %v1361 = vsel %vm1353, 1.0, %v1342
          %v1362 = vsel %vm1353, 1.0, %v1343
          %v1363 = vsel %vm1353, 1.0, %v1344
          %v1364 = vsel %vm1353, 1.0, %v1345
          %v1365 = vsel %vm1353, 1.0, %v1346
          %v1366 = vsel %vm1353, 1.0, %v1347
          %v1367 = vsel %vm1353, 1.0, %v1348
          %v1368 = vsel %vm1353, 1.0, %v1349
          %v1369 = vsel %vm1353, 1.0, %v1350
          %v1370 = vpack.c.bf16 %v1355, %v1354
          %v1371 = vpack.c.bf16 %v1357, %v1356
          %v1372 = vpack.c.bf16 %v1359, %v1358
          %v1373 = vpack.c.bf16 %v1361, %v1360
          %v1374 = vpack.c.bf16 %v1363, %v1362
          %v1375 = vpack.c.bf16 %v1365, %v1364
          %v1376 = vpack.c.bf16 %v1367, %v1366
          %v1377 = vpack.c.bf16 %v1369, %v1368
          %v1386 = vunpack.c.l.b16 %v1370
          %v1387 = vunpack.c.h.b16 %v1370
          %v1388 = vunpack.c.l.b16 %v1371
          %v1389 = vunpack.c.h.b16 %v1371
          %v1390 = vunpack.c.l.b16 %v1372
          %v1391 = vunpack.c.h.b16 %v1372
          %v1392 = vunpack.c.l.b16 %v1373
          %v1393 = vunpack.c.h.b16 %v1373
          %v1394 = vunpack.c.l.b16 %v1374
          %v1395 = vunpack.c.h.b16 %v1374
          %v1396 = vunpack.c.l.b16 %v1375
          %v1397 = vunpack.c.h.b16 %v1375
          %v1398 = vunpack.c.l.b16 %v1376
          %v1399 = vunpack.c.h.b16 %v1376
          %v1400 = vunpack.c.l.b16 %v1377
          %v1401 = vunpack.c.h.b16 %v1377
          %v1402 = vpack.c.b16 %v1386, %v1386
          %v1403 = vpack.c.b16 %v1387, %v1387
          %v1404 = vpack.c.b16 %v1388, %v1388
          %v1405 = vpack.c.b16 %v1389, %v1389
          %v1406 = vpack.c.b16 %v1390, %v1390
          %v1407 = vpack.c.b16 %v1391, %v1391
          %v1408 = vpack.c.b16 %v1392, %v1392
          %v1409 = vpack.c.b16 %v1393, %v1393
          %v1410 = vpack.c.b16 %v1394, %v1394
          %v1411 = vpack.c.b16 %v1395, %v1395
          %v1412 = vpack.c.b16 %v1396, %v1396
          %v1413 = vpack.c.b16 %v1397, %v1397
          %v1414 = vpack.c.b16 %v1398, %v1398
          %v1415 = vpack.c.b16 %v1399, %v1399
          %v1416 = vpack.c.b16 %v1400, %v1400
          %v1417 = vpack.c.b16 %v1401, %v1401
          %1434 = vst [vmem:[%s391] sm:$0xf] %v1402
          %1435 = vst [vmem:[%s391 + $0x4] sm:$0xf] %v1403
          %1436 = vst [vmem:[%s391 + $0x8] sm:$0xf] %v1404
          %1437 = vst [vmem:[%s391 + $0xc] sm:$0xf] %v1405
          %1438 = vst [vmem:[%s391 + $0x10] sm:$0xf] %v1406
          %1439 = vst [vmem:[%s391 + $0x14] sm:$0xf] %v1407
          %1440 = vst [vmem:[%s391 + $0x18] sm:$0xf] %v1408
          %1441 = vst [vmem:[%s391 + $0x1c] sm:$0xf] %v1409
          %1442 = vst [vmem:[%s391 + $0x20] sm:$0xf] %v1410
          %1443 = vst [vmem:[%s391 + $0x24] sm:$0xf] %v1411
          %1444 = vst [vmem:[%s391 + $0x28] sm:$0xf] %v1412
          %1445 = vst [vmem:[%s391 + $0x2c] sm:$0xf] %v1413
          %1446 = vst [vmem:[%s391 + $0x30] sm:$0xf] %v1414
          %1447 = vst [vmem:[%s391 + $0x34] sm:$0xf] %v1415
          %1448 = vst [vmem:[%s391 + $0x38] sm:$0xf] %v1416
          %1449 = vst [vmem:[%s391 + $0x3c] sm:$0xf] %v1417
        $region72: #{tpu_custom_call.1} parent=43 // pred_fallthru
          _
        %s1450 = sand.u32 %s190, 1
        %s1451 = scalar_lea.sflag [#allocation6], %s1450
        %s1452 = sand.u32 %s190, 1
        %s1453 = smul.addr %s1452, 64
        %s1454 = scalar_lea.vmem [#allocation13], %s1453
        // Predicated region
        $region73: #{tpu_custom_call.1} parent=43 // pred_check
          %p1455 = pneg %p200
        $region74: #{tpu_custom_call.1} parent=43 // pred_check_branch
          %1457 = sbr.rel (%p1455) target = $region76
        $region75: #{tpu_custom_call.1} parent=43 // pred_region
          %s1458 = smul.u32 16, %s31
          %s1460 = ssub.s32 1024, 1024
          %1461 = vsyncadd %s1451, %s1460
          %s1462 = smul.addr %s1458, 64
          %s1463 = scalar_lea.hbm %s6, %s1462
          %s1464 = sshll.u32 %s1454, 4
          %s1465 = int_to_ptr.vmem [resolvable:$true] %s1464
          %1470 = dma.vmem_to_hbm [thread:$0]  %s1465, 1024, %s1463, %s1451, 64, 64, 4
        $region76: #{tpu_custom_call.1} parent=43 // pred_fallthru
          _
      $region44: #{tpu_custom_call.1} parent=5 // pred_fallthru
        _
      %p1471 = scmp.le.s32.totalorder 2, %s22
      // Predicated region
      $region77: #{tpu_custom_call.1} parent=5 // pred_check
        %p1472 = pneg %p1471
      $region78: #{tpu_custom_call.1} parent=5 // pred_check_branch
        %1474 = sbr.rel (%p1472) target = $region80
      $region79: #{tpu_custom_call.1} parent=5 // pred_region
        %s1475 = ssub.s32 %s22, 2
        // Predicated region
        $region81: #{tpu_custom_call.1} parent=79 // pred_check
          %p1476 = pneg %p206
        $region82: #{tpu_custom_call.1} parent=79 // pred_check_branch
          %1478 = sbr.rel (%p1476) target = $region84
        $region83: #{tpu_custom_call.1} parent=79 // pred_region
          %s1479 = sand.u32 %s191, 1
          %s1480 = scalar_lea.sflag [#allocation6], %s1479
          %s1481 = sand.u32 %s191, 1
          %s1482 = smul.addr %s1481, 64
          %s1483 = scalar_lea.vmem [#allocation13], %s1482
          %1484 = dma.done %s1480, 1024
        $region84: #{tpu_custom_call.1} parent=79 // pred_fallthru
          _
      $region80: #{tpu_custom_call.1} parent=5 // pred_fallthru
        _
    $region6: #{tpu_custom_call.1} parent=1 // loop_footer
      %s26 = sadd.s32 1, %s22
    $region7: #{tpu_custom_call.1} parent=1 // loop_footer_branch
      %21 = sbr.rel target = $region3
    $region8: #{tpu_custom_call.1} parent=1 // loop_exit
      _
    %1485 = vsyncpa [#allocation5], 1
    %s1486 = scalar_lea.sflag [#allocation5], 1
    %1487 = vsyncpa %s1486, 1
    %1488 = vsyncpa [#allocation8], 1
    %s1489 = scalar_lea.sflag [#allocation8], 1
    %1490 = vsyncpa %s1489, 1
    %1491 = vsyncpa [#allocation11], 1
    %1492 = vsyncpa [#allocation6], 1
    %s1493 = scalar_lea.sflag [#allocation6], 1
    %1494 = vsyncpa %s1493, 1

</llo_original>
